<compile_context>
chip_gen: v7x
topology: tpu7x:2x2x1
jax: 0.10.0
libtpu: 0.0.40
codegen_flags: <defaults>
</compile_context>

<pallas_src>
import numpy as np
import jax
import jax.numpy as jnp
from jax import lax
from jax.experimental import pallas as pl
from jax.experimental.pallas import tpu as pltpu

EPS = 1e-5          # PyTorch BatchNorm1d default eps
FINAL_SIZE = 4      # ConvDecoder.final_size


# ----------------------------------------------------------------------------
# In-kernel helpers
# ----------------------------------------------------------------------------
def _convT_phase(h, w_ref):
    """ConvTranspose1d(kernel=4, stride=2, padding=1), no bias, phase-major.

    h     : (B, S, L0, C_in); storage (s, q) holds logical position j = q*S+s.
    w_ref : (4, C_in, C_out) VMEM ref; w_ref[k] == torch weight[:, :, k].

    Returns (B, 2S, L0, C_out) float32 with the same phase-major convention
    over the output positions (phase = t mod 2S, position = t div 2S), using
        out[2j]   = x[j] @ W1 + x[j-1] @ W3
        out[2j+1] = x[j] @ W2 + x[j+1] @ W0
    """
    B, S, L0, C_in = h.shape
    C_out = w_ref.shape[2]
    hf = h.reshape(B * S * L0, C_in)                       # free when L0 == 8
    taps = [
        jnp.dot(hf.astype(w_ref.dtype), w_ref[k],
                preferred_element_type=jnp.float32).reshape(B, S, L0, C_out)
        for k in range(4)
    ]
    t0, t1, t2, t3 = taps

    zrow = jnp.zeros((B, 1, 1, C_out), jnp.float32)
    # tap-3 at logical j-1: phase s-1 (same q); phase 0 wraps to (S-1, q-1).
    wrap3 = jnp.concatenate([zrow, t3[:, S - 1:S, :-1, :]], axis=2)
    t3m = wrap3 if S == 1 else jnp.concatenate([wrap3, t3[:, :S - 1]], axis=1)
    # tap-0 at logical j+1: phase s+1 (same q); phase S-1 wraps to (0, q+1).
    wrap0 = jnp.concatenate([t0[:, 0:1, 1:, :], zrow], axis=2)
    t0p = wrap0 if S == 1 else jnp.concatenate([t0[:, 1:], wrap0], axis=1)

    even = t1 + t3m                                        # output phases 2s
    odd = t2 + t0p                                         # output phases 2s+1
    ef = even.reshape(B * S, L0, C_out)
    of = odd.reshape(B * S, L0, C_out)
    # Interleave along the *leading* phase axis only: no sublane/lane movement.
    return jnp.stack([ef, of], axis=1).reshape(B, 2 * S, L0, C_out)


def _fold_to_len8(y):
    """(B, 2, 4, C) phase-major -> (B, 1, 8, C), sublane q' = 2q + p.

    The single interleave kept in the decoder: it runs once, on the first conv
    output, so all later layers use full 8-sublane tiles and every
    (B*S*8, C) <-> (B, S, 8, C) reshape afterwards is layout-free.
    """
    B, _, L0, C = y.shape
    y2 = jnp.stack([y[:, 0], y[:, 1]], axis=2)             # (B, 4, 2, C)
    return y2.reshape(B, 1, 2 * L0, C)


def _bn_relu(y, gamma, beta, out_dtype):
    """Training-mode BatchNorm1d + ReLU on a phase-major activation.

    Statistics reduce over (batch, phase, position), so they are layout
    agnostic.  One-pass sum / sum-of-squares in f32 (biased variance, eps=1e-5).
    The result is cast to the activation dtype (bf16 on v6e/v7x).
    """
    B, P, L0, C = y.shape
    yf = y.reshape(B * P * L0, C)                          # free (L0 == 8 here)
    inv_n = 1.0 / float(B * P * L0)
    s1 = jnp.sum(yf, axis=0, keepdims=True)                # (1, C)
    s2 = jnp.sum(yf * yf, axis=0, keepdims=True)           # (1, C)
    mean = s1 * inv_n
    var = jnp.maximum(s2 * inv_n - mean * mean, 0.0)
    scale = gamma * lax.rsqrt(var + EPS)                   # (1, C)
    shift = beta - mean * scale
    h = jnp.maximum(yf * scale + shift, 0.0).astype(out_dtype)
    return h.reshape(B, P, L0, C)


# ----------------------------------------------------------------------------
# Pallas kernel: whole decoder forward in one invocation.
# ----------------------------------------------------------------------------
def make_decoder_kernel(n_hidden):
    n_in = 3 + 3 * n_hidden + 2

    def kernel(*refs):
        out_ref = refs[n_in]
        z = refs[0][...]
        wl = refs[1][...]
        bl = refs[2][...]
        B = z.shape[0]
        max_c = wl.shape[1] // FINAL_SIZE
        act_dtype = wl.dtype

        # Linear + ReLU.  Weight columns are host-permuted to (l, c) order so
        # the split into (B, 4, max_c) is plain lane slicing.
        h2 = jnp.maximum(
            jnp.dot(z.astype(wl.dtype), wl,
                    preferred_element_type=jnp.float32) + bl, 0.0
        ).astype(act_dtype)
        x4 = jnp.stack([h2[:, l * max_c:(l + 1) * max_c]
                        for l in range(FINAL_SIZE)], axis=1)    # (B, 4, max_c)
        h = x4.reshape(B, 1, FINAL_SIZE, max_c)                 # S=1, L0=4

        idx = 3
        for li in range(n_hidden):
            w_ref = refs[idx]
            gamma = refs[idx + 1][...]
            beta = refs[idx + 2][...]
            idx += 3
            # ConvTranspose1d (conv bias omitted: cancelled by training-mode BN)
            y = _convT_phase(h, w_ref)
            if li == 0:
                y = _fold_to_len8(y)        # L0: 4 -> 8, the only interleave
            h = _bn_relu(y, gamma, beta, act_dtype)

        # ---- Final ConvTranspose1d (with bias) + Tanh, emitted lane-dense ----
        # C_out = input_channel is tiny (typically 1): an MXU matmul here would
        # run at <1% utilization and leave tanh/stores on 1..4 lanes, so the 4
        # taps are computed as VPU broadcast-MACs + lane reductions over the
        # (16) input channels and assembled straight into (B, 8, 2S).
        wf = refs[idx][...]                  # (in_ch*4, C_last) f32
        bf = refs[idx + 1][...]              # (1, in_ch)        f32
        in_ch = bf.shape[1]
        Bh, S, L0, C_last = h.shape
        hf32 = h.astype(jnp.float32)
        chans = []
        for c in range(in_ch):
            taps = []
            for k in range(4):
                wk = wf[c * 4 + k:c * 4 + k + 1, :].reshape(1, 1, 1, C_last)
                taps.append(jnp.sum(hf32 * wk, axis=3))          # (B, S, 8)
            t0, t1, t2, t3 = taps
            zrow = jnp.zeros((Bh, 1, 1), jnp.float32)
            wrap3 = jnp.concatenate([zrow, t3[:, S - 1:S, :-1]], axis=2)
            t3m = wrap3 if S == 1 else jnp.concatenate(
                [wrap3, t3[:, :S - 1]], axis=1)
            wrap0 = jnp.concatenate([t0[:, 0:1, 1:], zrow], axis=2)
            t0p = wrap0 if S == 1 else jnp.concatenate(
                [t0[:, 1:], wrap0], axis=1)
            even = t1 + t3m                                      # out[2j]
            odd = t2 + t0p                                       # out[2j+1]
            # Phase interleave along sublanes (one tiny tensor), then a single
            # minor-dims transpose -> (B, 8, 2S): positions dense on lanes.
            yc = jnp.stack([even, odd], axis=2).reshape(Bh, 2 * S, L0)
            yc = yc + bf[0:1, c:c + 1]
            chans.append(jnp.transpose(yc, (0, 2, 1)))           # (B, 8, 2S)
        out = jnp.stack(chans, axis=1)                           # (B,in_ch,8,2S)
        out_ref[...] = jnp.tanh(out)                             # lane-dense

    return kernel


# ----------------------------------------------------------------------------
# Host wrapper
# ----------------------------------------------------------------------------
def _vmem_capacity_bytes():
    try:
        info = pltpu.get_tpu_info()
        for attr in ("vmem_capacity_bytes", "vmem_bytes", "vmem_size_bytes"):
            v = getattr(info, attr, None)
            if v:
                return int(v)
    except Exception:
        pass
    return 64 * 2 ** 20     # conservative fallback: v7x per-TensorCore VMEM


def conv_decoder_forward(z, params):
    batch = z.shape[0]
    data_size = params["data_size"]
    in_ch = params["input_channel"]
    latent = z.shape[1]
    n_hidden = len(params["hidden"])

    inputs = [z, params["w_lin"], params["b_lin"]]
    for layer in params["hidden"]:
        inputs += [layer["w_taps"], layer["gamma"], layer["beta"]]
    inputs += [params["w_final"], params["b_final"]]

    out_struct = jax.ShapeDtypeStruct((batch, in_ch, 8, data_size // 8),
                                      jnp.float32)

    # ---- cost estimate (advisory; helps XLA schedule around the call) ----
    max_c = params["w_lin"].shape[1] // FINAL_SIZE
    flops = 2 * batch * latent * FINAL_SIZE * max_c
    length = FINAL_SIZE
    for layer in params["hidden"]:
        _, c_in, c_out = layer["w_taps"].shape
        flops += 2 * batch * length * c_in * 4 * c_out
        length *= 2
    c_last = params["w_final"].shape[1]
    flops += 2 * batch * length * c_last * 4 * in_ch
    in_bytes = sum(int(np.prod(x.shape)) * x.dtype.itemsize for x in inputs)
    out_bytes = batch * in_ch * data_size * 4
    cost = pl.CostEstimate(flops=int(flops),
                           transcendentals=int(batch * data_size * in_ch),
                           bytes_accessed=int(in_bytes + out_bytes))

    # ---- VMEM limit: sized from resident buffers, capped by the real chip
    # (v7x: 64 MiB / TensorCore; v5e / v6e: 128 MiB). ----
    act_bytes = batch * 8 * data_size * 4            # one f32 activation
    need = in_bytes + out_bytes + 12 * act_bytes     # taps + BN temporaries
    vmem_limit = int(max(4 * 2 ** 20,
                         min(int(0.8 * _vmem_capacity_bytes()), 2 * need)))
    # TODO(synk): for data_size >= ~1k, stream per-layer w_taps from HBM
    # (memory_space=pl.ANY + pltpu.make_async_copy double buffering) instead
    # of keeping all weights VMEM-resident, and shard the batch over both v7x
    # TensorCores with a cross-core BatchNorm reduction (or eval-mode BN).

    kernel = make_decoder_kernel(n_hidden)
    out = pl.pallas_call(
        kernel,
        out_shape=out_struct,
        in_specs=[pl.BlockSpec(memory_space=pltpu.MemorySpace.VMEM)
                  for _ in inputs],
        out_specs=pl.BlockSpec(memory_space=pltpu.MemorySpace.VMEM),
        compiler_params=pltpu.CompilerParams(vmem_limit_bytes=vmem_limit),
        cost_estimate=cost,
    )(*inputs)

    # (B, in_ch, 8, data_size//8) -> (B, in_ch, data_size): contiguous merge of
    # the last two dims (position-major, phase-minor) == logical order; free.
    out = out.reshape(batch, in_ch, data_size)
    if in_ch == 1:
        out = out[:, 0, :]          # torch.squeeze(out, dim=1)
    return out


# ----------------------------------------------------------------------------
# Deterministic parameter init (shapes follow ConvDecoder.__init__).
# ----------------------------------------------------------------------------
def init_params(key, data_size, input_channel, latent_size, use_bf16=True):
    assert data_size >= 16 and (data_size & (data_size - 1)) == 0
    layer_num = int(np.log2(data_size)) - 3
    max_c = data_size * 2
    # bf16 weights + activations: 2x MXU rate and half the VMEM on v6e/v7x.
    # On v5e (no bf16 VALU) call with use_bf16=False.
    wdtype = jnp.bfloat16 if use_bf16 else jnp.float32

    n_keys = 2 + 4 * layer_num + 2
    keys = jax.random.split(key, n_keys)
    ki = iter(range(n_keys))

    raw = {"maxC": max_c, "hidden": []}
    params = {"data_size": data_size, "input_channel": input_channel,
              "hidden": []}

    # Linear(latent_size, final_size * max_c); torch weight is (out, in)
    w_lin = np.asarray(jax.random.normal(
        keys[next(ki)], (FINAL_SIZE * max_c, latent_size), jnp.float32)) * 0.1
    b_lin = np.asarray(jax.random.normal(
        keys[next(ki)], (FINAL_SIZE * max_c,), jnp.float32)) * 0.1
    raw["lin"] = (w_lin, b_lin)
    # Permute output columns from torch's (c, l) order to (l, c) so the
    # in-kernel split into (B, 4, max_c) is plain lane slicing.
    w_k = w_lin.T.reshape(latent_size, max_c, FINAL_SIZE)
    w_k = w_k.transpose(0, 2, 1).reshape(latent_size, FINAL_SIZE * max_c)
    b_k = b_lin.reshape(max_c, FINAL_SIZE).T.reshape(-1)
    params["w_lin"] = jnp.asarray(w_k, dtype=wdtype)
    params["b_lin"] = jnp.asarray(b_k, dtype=jnp.float32)[None, :]

    prev_c = max_c
    L = FINAL_SIZE
    for i in range(layer_num):
        out_c = max_c // 2 ** (i + 1)
        w = np.asarray(jax.random.normal(
            keys[next(ki)], (prev_c, out_c, 4), jnp.float32)) * 0.1
        bconv = np.asarray(jax.random.normal(
            keys[next(ki)], (out_c,), jnp.float32)) * 0.1
        gamma = 1.0 + 0.1 * np.asarray(jax.random.normal(
            keys[next(ki)], (out_c,), jnp.float32))
        beta = 0.1 * np.asarray(jax.random.normal(
            keys[next(ki)], (out_c,), jnp.float32))
        raw["hidden"].append((w, bconv, gamma, beta))

        # (C_in, C_out, K) -> (K, C_in, C_out): one pre-split matrix per tap.
        # NOTE: the conv bias is NOT fed to the kernel -- it is exactly
        # cancelled by the training-mode BatchNorm.  The NumPy reference still
        # applies it, which validates the cancellation.
        params["hidden"].append(dict(
            w_taps=jnp.asarray(w.transpose(2, 0, 1), dtype=wdtype),
            gamma=jnp.asarray(gamma, dtype=jnp.float32)[None, :],
            beta=jnp.asarray(beta, dtype=jnp.float32)[None, :],
        ))
        prev_c = out_c
        L = 2 * L

    # final ConvTranspose1d(prev_c, input_channel, 4, 2, 1) + Tanh (with bias)
    w_f = np.asarray(jax.random.normal(
        keys[next(ki)], (prev_c, input_channel, 4), jnp.float32)) * 0.1
    b_f = np.asarray(jax.random.normal(
        keys[next(ki)], (input_channel,), jnp.float32)) * 0.1
    raw["final"] = (w_f, b_f)
    assert 2 * L == data_size
    # (C_in, in_ch, K) -> (in_ch*4, C_in): row c*4+k = w_f[:, c, k]; f32 (tiny),
    # consumed by the VPU broadcast-MAC tail rather than the MXU.
    params["w_final"] = jnp.asarray(
        w_f.transpose(1, 2, 0).reshape(input_channel * 4, prev_c),
        dtype=jnp.float32)
    params["b_final"] = jnp.asarray(b_f, dtype=jnp.float32)[None, :]
    return params, raw


# ----------------------------------------------------------------------------
# Independent NumPy reference (explicit ConvTranspose1d loops, training-mode BN)
# ----------------------------------------------------------------------------
def _convT_ref(x, w, b, stride=2, padding=1):
    B, C_in, L_in = x.shape
    _, C_out, K = w.shape
    L_out = (L_in - 1) * stride - 2 * padding + K
    y = np.zeros((B, C_out, L_out), dtype=np.float64)
    for l in range(L_in):
        for k in range(K):
            t = l * stride - padding + k
            if 0 <= t < L_out:
                y[:, :, t] += np.einsum("bi,io->bo", x[:, :, l], w[:, :, k])
    return y + b[None, :, None]


def reference_forward(z, raw):
    z = np.asarray(z, dtype=np.float64)
    w_lin, b_lin = raw["lin"]
    h = np.maximum(z @ w_lin.T + b_lin, 0.0)
    x = h.reshape(z.shape[0], raw["maxC"], FINAL_SIZE)
    for (w, b, gamma, beta) in raw["hidden"]:
        x = _convT_ref(x, w, b)
        mean = x.mean(axis=(0, 2), keepdims=True)
        var = x.var(axis=(0, 2), keepdims=True)   # biased, like PyTorch BN
        x = (x - mean) / np.sqrt(var + EPS)
        x = x * gamma[None, :, None] + beta[None, :, None]
        x = np.maximum(x, 0.0)
    w_f, b_f = raw["final"]
    x = np.tanh(_convT_ref(x, w_f, b_f))
    if x.shape[1] == 1:
        x = x[:, 0, :]
    return x


if __name__ == "__main__":
    configs = [
        # (data_size, input_channel, latent, batch, use_bf16, rtol, atol)
        (16, 1, 8, 2, False, 1e-4, 1e-4),   # f32 weights: tight tolerance
        (16, 1, 8, 2, True, 5e-2, 5e-2),    # bf16 weights: bf16-level tolerance
        (32, 1, 8, 3, False, 1e-4, 1e-4),   # two hidden layers, odd batch
    ]
    key = jax.random.PRNGKey(0)
    for (ds, ic, ls, bsz, use_bf16, rtol, atol) in configs:
        key, kp, kz = jax.random.split(key, 3)
        params, raw = init_params(kp, ds, ic, ls, use_bf16=use_bf16)
        z = jax.random.normal(kz, (bsz, ls), jnp.float32)

        out = conv_decoder_forward(z, params)
        out = jax.block_until_ready(out)

        ref = reference_forward(z, raw)
        np.testing.assert_allclose(np.asarray(out), ref, rtol=rtol, atol=atol)

    print("KERNEL_OK")
</pallas_src>

<mosaic_0001>
module attributes {stable_mosaic.version = 11 : i64} {
  func.func @kernel(%arg0: memref<2x8xf32, #tpu.memory_space<vmem>>, %arg1: memref<8x128xf32, #tpu.memory_space<vmem>>, %arg2: memref<1x128xf32, #tpu.memory_space<vmem>>, %arg3: memref<4x32x16xf32, #tpu.memory_space<vmem>>, %arg4: memref<1x16xf32, #tpu.memory_space<vmem>>, %arg5: memref<1x16xf32, #tpu.memory_space<vmem>>, %arg6: memref<4x16xf32, #tpu.memory_space<vmem>>, %arg7: memref<1x1xf32, #tpu.memory_space<vmem>>, %arg8: memref<2x1x8x2xf32, #tpu.memory_space<vmem>>) attributes {dimension_semantics = [], scalar_prefetch = 0 : i64, scratch_operands = 0 : i64, tpu.core_type = #tpu.core_type<tc>} {
    %c0 = arith.constant 0 : index
    %c0_0 = arith.constant 0 : index
    %0 = vector.load %arg0[%c0, %c0_0] : memref<2x8xf32, #tpu.memory_space<vmem>>, vector<2x8xf32>
    %c0_1 = arith.constant 0 : index
    %c0_2 = arith.constant 0 : index
    %1 = vector.load %arg1[%c0_1, %c0_2] : memref<8x128xf32, #tpu.memory_space<vmem>>, vector<8x128xf32>
    %c0_3 = arith.constant 0 : index
    %c0_4 = arith.constant 0 : index
    %2 = vector.load %arg2[%c0_3, %c0_4] : memref<1x128xf32, #tpu.memory_space<vmem>>, vector<1x128xf32>
    %cst = arith.constant dense<0.000000e+00> : vector<2x128xf32>
    %3 = tpu.matmul %0, %1, %cst {dimension_numbers = #tpu.dot_dimension_numbers<[1], [0], [0], [1], [0, 0, 1, 1], [], []>} : vector<2x8xf32>, vector<8x128xf32>, vector<2x128xf32> -> vector<2x128xf32>
    %4 = vector.broadcast %2 : vector<1x128xf32> to vector<2x128xf32>
    %5 = arith.addf %3, %4 : vector<2x128xf32>
    %cst_5 = arith.constant 0.000000e+00 : f32
    %6 = vector.broadcast %cst_5 : f32 to vector<2x128xf32>
    %7 = arith.maximumf %5, %6 : vector<2x128xf32>
    %8 = vector.extract_strided_slice %7 {offsets = [0, 0], sizes = [2, 32], strides = [1, 1]} : vector<2x128xf32> to vector<2x32xf32>
    %9 = vector.extract_strided_slice %7 {offsets = [0, 32], sizes = [2, 32], strides = [1, 1]} : vector<2x128xf32> to vector<2x32xf32>
    %10 = vector.extract_strided_slice %7 {offsets = [0, 64], sizes = [2, 32], strides = [1, 1]} : vector<2x128xf32> to vector<2x32xf32>
    %11 = vector.extract_strided_slice %7 {offsets = [0, 96], sizes = [2, 32], strides = [1, 1]} : vector<2x128xf32> to vector<2x32xf32>
    %12 = vector.shape_cast %8 : vector<2x32xf32> to vector<2x1x32xf32>
    %13 = vector.shape_cast %9 : vector<2x32xf32> to vector<2x1x32xf32>
    %14 = vector.shape_cast %10 : vector<2x32xf32> to vector<2x1x32xf32>
    %15 = vector.shape_cast %11 : vector<2x32xf32> to vector<2x1x32xf32>
    %16 = tpu.concatenate %12, %13, %14, %15 in 1 : vector<2x1x32xf32>, vector<2x1x32xf32>, vector<2x1x32xf32>, vector<2x1x32xf32> -> vector<2x4x32xf32>
    %17 = vector.shape_cast %16 : vector<2x4x32xf32> to vector<2x1x4x32xf32>
    %c0_6 = arith.constant 0 : index
    %c0_7 = arith.constant 0 : index
    %18 = vector.load %arg4[%c0_6, %c0_7] : memref<1x16xf32, #tpu.memory_space<vmem>>, vector<1x16xf32>
    %c0_8 = arith.constant 0 : index
    %c0_9 = arith.constant 0 : index
    %19 = vector.load %arg5[%c0_8, %c0_9] : memref<1x16xf32, #tpu.memory_space<vmem>>, vector<1x16xf32>
    %20 = vector.shape_cast %17 : vector<2x1x4x32xf32> to vector<8x32xf32>
    %c0_10 = arith.constant 0 : index
    %c0_11 = arith.constant 0 : index
    %c0_12 = arith.constant 0 : index
    %21 = vector.load %arg3[%c0_10, %c0_11, %c0_12] : memref<4x32x16xf32, #tpu.memory_space<vmem>>, vector<1x32x16xf32>
    %22 = vector.shape_cast %21 : vector<1x32x16xf32> to vector<32x16xf32>
    %cst_13 = arith.constant dense<0.000000e+00> : vector<8x16xf32>
    %23 = tpu.matmul %20, %22, %cst_13 {dimension_numbers = #tpu.dot_dimension_numbers<[1], [0], [0], [1], [0, 0, 1, 1], [], []>} : vector<8x32xf32>, vector<32x16xf32>, vector<8x16xf32> -> vector<8x16xf32>
    %24 = vector.shape_cast %23 : vector<8x16xf32> to vector<2x1x4x16xf32>
    %c1 = arith.constant 1 : index
    %c0_14 = arith.constant 0 : index
    %c0_15 = arith.constant 0 : index
    %25 = vector.load %arg3[%c1, %c0_14, %c0_15] : memref<4x32x16xf32, #tpu.memory_space<vmem>>, vector<1x32x16xf32>
    %26 = vector.shape_cast %25 : vector<1x32x16xf32> to vector<32x16xf32>
    %cst_16 = arith.constant dense<0.000000e+00> : vector<8x16xf32>
    %27 = tpu.matmul %20, %26, %cst_16 {dimension_numbers = #tpu.dot_dimension_numbers<[1], [0], [0], [1], [0, 0, 1, 1], [], []>} : vector<8x32xf32>, vector<32x16xf32>, vector<8x16xf32> -> vector<8x16xf32>
    %28 = vector.shape_cast %27 : vector<8x16xf32> to vector<2x1x4x16xf32>
    %c2 = arith.constant 2 : index
    %c0_17 = arith.constant 0 : index
    %c0_18 = arith.constant 0 : index
    %29 = vector.load %arg3[%c2, %c0_17, %c0_18] : memref<4x32x16xf32, #tpu.memory_space<vmem>>, vector<1x32x16xf32>
    %30 = vector.shape_cast %29 : vector<1x32x16xf32> to vector<32x16xf32>
    %cst_19 = arith.constant dense<0.000000e+00> : vector<8x16xf32>
    %31 = tpu.matmul %20, %30, %cst_19 {dimension_numbers = #tpu.dot_dimension_numbers<[1], [0], [0], [1], [0, 0, 1, 1], [], []>} : vector<8x32xf32>, vector<32x16xf32>, vector<8x16xf32> -> vector<8x16xf32>
    %32 = vector.shape_cast %31 : vector<8x16xf32> to vector<2x1x4x16xf32>
    %c3 = arith.constant 3 : index
    %c0_20 = arith.constant 0 : index
    %c0_21 = arith.constant 0 : index
    %33 = vector.load %arg3[%c3, %c0_20, %c0_21] : memref<4x32x16xf32, #tpu.memory_space<vmem>>, vector<1x32x16xf32>
    %34 = vector.shape_cast %33 : vector<1x32x16xf32> to vector<32x16xf32>
    %cst_22 = arith.constant dense<0.000000e+00> : vector<8x16xf32>
    %35 = tpu.matmul %20, %34, %cst_22 {dimension_numbers = #tpu.dot_dimension_numbers<[1], [0], [0], [1], [0, 0, 1, 1], [], []>} : vector<8x32xf32>, vector<32x16xf32>, vector<8x16xf32> -> vector<8x16xf32>
    %36 = vector.shape_cast %35 : vector<8x16xf32> to vector<2x1x4x16xf32>
    %cst_23 = arith.constant 0.000000e+00 : f32
    %37 = vector.broadcast %cst_23 : f32 to vector<2x1x1x16xf32>
    %38 = vector.extract_strided_slice %36 {offsets = [0, 0, 0, 0], sizes = [2, 1, 3, 16], strides = [1, 1, 1, 1]} : vector<2x1x4x16xf32> to vector<2x1x3x16xf32>
    %39 = tpu.concatenate %37, %38 in 2 : vector<2x1x1x16xf32>, vector<2x1x3x16xf32> -> vector<2x1x4x16xf32>
    %40 = vector.extract_strided_slice %24 {offsets = [0, 0, 1, 0], sizes = [2, 1, 3, 16], strides = [1, 1, 1, 1]} : vector<2x1x4x16xf32> to vector<2x1x3x16xf32>
    %41 = tpu.concatenate %40, %37 in 2 : vector<2x1x3x16xf32>, vector<2x1x1x16xf32> -> vector<2x1x4x16xf32>
    %42 = arith.addf %28, %39 : vector<2x1x4x16xf32>
    %43 = arith.addf %32, %41 : vector<2x1x4x16xf32>
    %44 = vector.shape_cast %42 : vector<2x1x4x16xf32> to vector<2x4x16xf32>
    %45 = vector.shape_cast %43 : vector<2x1x4x16xf32> to vector<2x4x16xf32>
    %46 = vector.shape_cast %44 : vector<2x4x16xf32> to vector<2x1x4x16xf32>
    %47 = vector.shape_cast %45 : vector<2x4x16xf32> to vector<2x1x4x16xf32>
    %48 = tpu.concatenate %46, %47 in 1 : vector<2x1x4x16xf32>, vector<2x1x4x16xf32> -> vector<2x2x4x16xf32>
    %49 = vector.extract_strided_slice %48 {offsets = [0, 0, 0, 0], sizes = [2, 1, 4, 16], strides = [1, 1, 1, 1]} : vector<2x2x4x16xf32> to vector<2x1x4x16xf32>
    %50 = vector.shape_cast %49 : vector<2x1x4x16xf32> to vector<2x4x16xf32>
    %51 = vector.extract_strided_slice %48 {offsets = [0, 1, 0, 0], sizes = [2, 1, 4, 16], strides = [1, 1, 1, 1]} : vector<2x2x4x16xf32> to vector<2x1x4x16xf32>
    %52 = vector.shape_cast %51 : vector<2x1x4x16xf32> to vector<2x4x16xf32>
    %53 = vector.shape_cast %50 : vector<2x4x16xf32> to vector<2x4x1x16xf32>
    %54 = vector.shape_cast %52 : vector<2x4x16xf32> to vector<2x4x1x16xf32>
    %55 = tpu.concatenate %53, %54 in 2 : vector<2x4x1x16xf32>, vector<2x4x1x16xf32> -> vector<2x4x2x16xf32>
    %56 = vector.shape_cast %55 : vector<2x4x2x16xf32> to vector<2x1x8x16xf32>
    %57 = vector.shape_cast %56 : vector<2x1x8x16xf32> to vector<16x16xf32>
    %cst_24 = arith.constant dense<0.000000e+00> : vector<16xf32>
    %58 = vector.multi_reduction <add>, %57, %cst_24 [0] : vector<16x16xf32> to vector<16xf32>
    %59 = vector.shape_cast %58 : vector<16xf32> to vector<1x16xf32>
    %60 = arith.mulf %57, %57 : vector<16x16xf32>
    %cst_25 = arith.constant dense<0.000000e+00> : vector<16xf32>
    %61 = vector.multi_reduction <add>, %60, %cst_25 [0] : vector<16x16xf32> to vector<16xf32>
    %62 = vector.shape_cast %61 : vector<16xf32> to vector<1x16xf32>
    %cst_26 = arith.constant 6.250000e-02 : f32
    %63 = vector.broadcast %cst_26 : f32 to vector<1x16xf32>
    %64 = arith.mulf %59, %63 : vector<1x16xf32>
    %cst_27 = arith.constant 6.250000e-02 : f32
    %65 = vector.broadcast %cst_27 : f32 to vector<1x16xf32>
    %66 = arith.mulf %62, %65 : vector<1x16xf32>
    %67 = arith.mulf %64, %64 : vector<1x16xf32>
    %68 = arith.subf %66, %67 : vector<1x16xf32>
    %cst_28 = arith.constant 0.000000e+00 : f32
    %69 = vector.broadcast %cst_28 : f32 to vector<1x16xf32>
    %70 = arith.maximumf %68, %69 : vector<1x16xf32>
    %cst_29 = arith.constant 9.99999974E-6 : f32
    %71 = vector.broadcast %cst_29 : f32 to vector<1x16xf32>
    %72 = arith.addf %70, %71 : vector<1x16xf32>
    %73 = math.rsqrt %72 : vector<1x16xf32>
    %74 = arith.mulf %18, %73 : vector<1x16xf32>
    %75 = arith.mulf %64, %74 : vector<1x16xf32>
    %76 = arith.subf %19, %75 : vector<1x16xf32>
    %77 = vector.broadcast %74 : vector<1x16xf32> to vector<16x16xf32>
    %78 = arith.mulf %57, %77 : vector<16x16xf32>
    %79 = vector.broadcast %76 : vector<1x16xf32> to vector<16x16xf32>
    %80 = arith.addf %78, %79 : vector<16x16xf32>
    %cst_30 = arith.constant 0.000000e+00 : f32
    %81 = vector.broadcast %cst_30 : f32 to vector<16x16xf32>
    %82 = arith.maximumf %80, %81 : vector<16x16xf32>
    %83 = vector.shape_cast %82 : vector<16x16xf32> to vector<2x1x8x16xf32>
    %c0_31 = arith.constant 0 : index
    %c0_32 = arith.constant 0 : index
    %84 = vector.load %arg6[%c0_31, %c0_32] : memref<4x16xf32, #tpu.memory_space<vmem>>, vector<4x16xf32>
    %c0_33 = arith.constant 0 : index
    %c0_34 = arith.constant 0 : index
    %85 = vector.load %arg7[%c0_33, %c0_34] : memref<1x1xf32, #tpu.memory_space<vmem>>, vector<1x1xf32>
    %86 = vector.extract_strided_slice %84 {offsets = [0, 0], sizes = [1, 16], strides = [1, 1]} : vector<4x16xf32> to vector<1x16xf32>
    %87 = vector.shape_cast %86 : vector<1x16xf32> to vector<1x1x1x16xf32>
    %88 = vector.broadcast %87 : vector<1x1x1x16xf32> to vector<2x1x8x16xf32>
    %89 = arith.mulf %83, %88 : vector<2x1x8x16xf32>
    %cst_35 = arith.constant dense<0.000000e+00> : vector<2x1x8xf32>
    %90 = vector.multi_reduction <add>, %89, %cst_35 [3] : vector<2x1x8x16xf32> to vector<2x1x8xf32>
    %91 = vector.extract_strided_slice %84 {offsets = [1, 0], sizes = [1, 16], strides = [1, 1]} : vector<4x16xf32> to vector<1x16xf32>
    %92 = vector.shape_cast %91 : vector<1x16xf32> to vector<1x1x1x16xf32>
    %93 = vector.broadcast %92 : vector<1x1x1x16xf32> to vector<2x1x8x16xf32>
    %94 = arith.mulf %83, %93 : vector<2x1x8x16xf32>
    %cst_36 = arith.constant dense<0.000000e+00> : vector<2x1x8xf32>
    %95 = vector.multi_reduction <add>, %94, %cst_36 [3] : vector<2x1x8x16xf32> to vector<2x1x8xf32>
    %96 = vector.extract_strided_slice %84 {offsets = [2, 0], sizes = [1, 16], strides = [1, 1]} : vector<4x16xf32> to vector<1x16xf32>
    %97 = vector.shape_cast %96 : vector<1x16xf32> to vector<1x1x1x16xf32>
    %98 = vector.broadcast %97 : vector<1x1x1x16xf32> to vector<2x1x8x16xf32>
    %99 = arith.mulf %83, %98 : vector<2x1x8x16xf32>
    %cst_37 = arith.constant dense<0.000000e+00> : vector<2x1x8xf32>
    %100 = vector.multi_reduction <add>, %99, %cst_37 [3] : vector<2x1x8x16xf32> to vector<2x1x8xf32>
    %101 = vector.extract_strided_slice %84 {offsets = [3, 0], sizes = [1, 16], strides = [1, 1]} : vector<4x16xf32> to vector<1x16xf32>
    %102 = vector.shape_cast %101 : vector<1x16xf32> to vector<1x1x1x16xf32>
    %103 = vector.broadcast %102 : vector<1x1x1x16xf32> to vector<2x1x8x16xf32>
    %104 = arith.mulf %83, %103 : vector<2x1x8x16xf32>
    %cst_38 = arith.constant dense<0.000000e+00> : vector<2x1x8xf32>
    %105 = vector.multi_reduction <add>, %104, %cst_38 [3] : vector<2x1x8x16xf32> to vector<2x1x8xf32>
    %cst_39 = arith.constant 0.000000e+00 : f32
    %106 = vector.broadcast %cst_39 : f32 to vector<2x1x1xf32>
    %107 = vector.extract_strided_slice %105 {offsets = [0, 0, 0], sizes = [2, 1, 7], strides = [1, 1, 1]} : vector<2x1x8xf32> to vector<2x1x7xf32>
    %108 = tpu.concatenate %106, %107 in 2 : vector<2x1x1xf32>, vector<2x1x7xf32> -> vector<2x1x8xf32>
    %109 = vector.extract_strided_slice %90 {offsets = [0, 0, 1], sizes = [2, 1, 7], strides = [1, 1, 1]} : vector<2x1x8xf32> to vector<2x1x7xf32>
    %110 = tpu.concatenate %109, %106 in 2 : vector<2x1x7xf32>, vector<2x1x1xf32> -> vector<2x1x8xf32>
    %111 = arith.addf %95, %108 : vector<2x1x8xf32>
    %112 = arith.addf %100, %110 : vector<2x1x8xf32>
    %113 = vector.shape_cast %111 : vector<2x1x8xf32> to vector<2x1x1x8xf32>
    %114 = vector.shape_cast %112 : vector<2x1x8xf32> to vector<2x1x1x8xf32>
    %115 = tpu.concatenate %113, %114 in 2 : vector<2x1x1x8xf32>, vector<2x1x1x8xf32> -> vector<2x1x2x8xf32>
    %116 = vector.shape_cast %115 : vector<2x1x2x8xf32> to vector<2x2x8xf32>
    %117 = vector.shape_cast %85 : vector<1x1xf32> to vector<1x1x1xf32>
    %118 = vector.broadcast %117 : vector<1x1x1xf32> to vector<2x2x8xf32>
    %119 = arith.addf %116, %118 : vector<2x2x8xf32>
    %120 = tpu.transpose %119, [0, 2, 1] : vector<2x2x8xf32> -> vector<2x8x2xf32>
    %121 = vector.shape_cast %120 : vector<2x8x2xf32> to vector<2x1x8x2xf32>
    %122 = math.tanh %121 : vector<2x1x8x2xf32>
    %c0_40 = arith.constant 0 : index
    %c0_41 = arith.constant 0 : index
    %c0_42 = arith.constant 0 : index
    %c0_43 = arith.constant 0 : index
    %123 = vector.load %arg8[%c0_40, %c0_41, %c0_42, %c0_43] : memref<2x1x8x2xf32, #tpu.memory_space<vmem>>, vector<2x1x8x2xf32>
    tpu.vector_store %arg8[%c0_40, %c0_41, %c0_42, %c0_43], %122 {strides = array<i32>} : memref<2x1x8x2xf32, #tpu.memory_space<vmem>>, vector<2x1x8x2xf32>,
    return
  }
}

</mosaic_0001>

<llo_original>
// kernel: tpu_custom_call.1
$region0: #{tpu_custom_call.1}
  #allocation0 [shape = 'u32[]', space=smem, size = 0x4, offset = 0x4, fixed_abs, tag = 'smem constant byte address 0x4 - core index']
  #allocation1 [shape = 'u32[144,128]{1,0:T(1,128)}', space=vmem, size = 0x12000, scoped, tag = 'internal scratch']
  #allocation2 [shape = 'f32[1,1]{1,0:T(1,128)S(1)}', space=vmem, size = 0x200, scoped, tag = 'scoped memory for tpu_custom_call.1']
  %s0 = inlined_call_operand.vmem [shape: f32[2,8], index: 0, kind: input, shape index: {}]
  %s1 = inlined_call_operand.vmem [shape: f32[8,128], index: 1, kind: input, shape index: {}]
  %s2 = inlined_call_operand.vmem [shape: f32[1,128], index: 2, kind: input, shape index: {}]
  %s3 = inlined_call_operand.vmem [shape: f32[4,32,16], index: 3, kind: input, shape index: {}]
  %s4 = inlined_call_operand.vmem [shape: f32[1,16], index: 4, kind: input, shape index: {}]
  %s5 = inlined_call_operand.vmem [shape: f32[1,16], index: 5, kind: input, shape index: {}]
  %s6 = inlined_call_operand.vmem [shape: f32[4,16], index: 6, kind: input, shape index: {}]
  %s7 = inlined_call_operand.<no memory space> [shape: f32[1,1], index: 7, kind: input, shape index: {}]
  %s8 = inlined_call_operand.vmem [shape: f32[2,1,8,2], index: 8, kind: output, shape index: {}]
  %s9 = sld [smem:[#allocation0]]
  $region42: #{tpu_custom_call.1} parent=0
    _
  %s11 = ssub.s32 1, %s9
  %s12 = scalar_select 0, %s11, %s9
  %v13 = vstv %s7
  %14 = vst [vmem:[#allocation2] sm:$0x1] %v13
  // Predicated region
  $region2: #{tpu_custom_call.1} parent=0 // pred_check
    _
  $region3: #{tpu_custom_call.1} parent=0 // pred_check_branch
    %16 = sbr.rel (0) target = $region5
  $region4: #{tpu_custom_call.1} parent=0 // pred_region
    _
  $region5: #{tpu_custom_call.1} parent=0 // pred_fallthru
    _
  // Predicated region
  $region6: #{tpu_custom_call.1} parent=0 // pred_check
    _
  $region7: #{tpu_custom_call.1} parent=0 // pred_check_branch
    %18 = sbr.rel (0) target = $region9
  $region8: #{tpu_custom_call.1} parent=0 // pred_region
    _
  $region9: #{tpu_custom_call.1} parent=0 // pred_fallthru
    _
  // Predicated region
  $region10: #{tpu_custom_call.1} parent=0 // pred_check
    _
  $region11: #{tpu_custom_call.1} parent=0 // pred_check_branch
    %20 = sbr.rel (0) target = $region13
  $region12: #{tpu_custom_call.1} parent=0 // pred_region
    _
  $region13: #{tpu_custom_call.1} parent=0 // pred_fallthru
    _
  // Predicated region
  $region14: #{tpu_custom_call.1} parent=0 // pred_check
    _
  $region15: #{tpu_custom_call.1} parent=0 // pred_check_branch
    %22 = sbr.rel (0) target = $region17
  $region16: #{tpu_custom_call.1} parent=0 // pred_region
    _
  $region17: #{tpu_custom_call.1} parent=0 // pred_fallthru
    _
  // Predicated region
  $region18: #{tpu_custom_call.1} parent=0 // pred_check
    _
  $region19: #{tpu_custom_call.1} parent=0 // pred_check_branch
    %24 = sbr.rel (0) target = $region21
  $region20: #{tpu_custom_call.1} parent=0 // pred_region
    _
  $region21: #{tpu_custom_call.1} parent=0 // pred_fallthru
    _
  // Predicated region
  $region22: #{tpu_custom_call.1} parent=0 // pred_check
    _
  $region23: #{tpu_custom_call.1} parent=0 // pred_check_branch
    %26 = sbr.rel (0) target = $region25
  $region24: #{tpu_custom_call.1} parent=0 // pred_region
    _
  $region25: #{tpu_custom_call.1} parent=0 // pred_fallthru
    _
  // Predicated region
  $region26: #{tpu_custom_call.1} parent=0 // pred_check
    _
  $region27: #{tpu_custom_call.1} parent=0 // pred_check_branch
    %28 = sbr.rel (0) target = $region29
  $region28: #{tpu_custom_call.1} parent=0 // pred_region
    _
  $region29: #{tpu_custom_call.1} parent=0 // pred_fallthru
    _
  // Predicated region
  $region30: #{tpu_custom_call.1} parent=0 // pred_check
    _
  $region31: #{tpu_custom_call.1} parent=0 // pred_check_branch
    %30 = sbr.rel (0) target = $region33
  $region32: #{tpu_custom_call.1} parent=0 // pred_region
    _
  $region33: #{tpu_custom_call.1} parent=0 // pred_fallthru
    _
  %v31 = vld [vmem:[%s0] sm:$0x3]
  %v32 = vld [vmem:[%s1] sm:$0xff]
  %v33 = vld [vmem:[%s2] sm:$0x1]
  %v35 = vlaneseq
  %v36 = vshrl.u32 %v35, 7
  %v37 = vsub.s32 0, %v36
  %v38 = vrot.slane %v33, %v37
  %vm40 = vcmask 64512
  %v42 = vsel %vm40, %v31, 0
  %44 = vmatprep.subr.mxu0 0.0
  %45 = vmatpush1.msra.mxu0 %v32
  %46 = vmatprep.subr.mxu0 0.0
  %47 = vmatpush1.msra.mxu0 0.0
  %48 = vmatprep.subr.mxu0 0.0
  %49 = vmatpush1.msra.mxu0 0.0
  %50 = vmatprep.subr.mxu0 0.0
  %51 = vmatpush1.msra.mxu0 0.0
  %52 = vmatprep.subr.mxu0 0.0
  %53 = vmatpush1.msra.mxu0 0.0
  %54 = vmatprep.subr.mxu0 0.0
  %55 = vmatpush1.msra.mxu0 0.0
  %56 = vmatprep.subr.mxu0 0.0
  %57 = vmatpush1.msra.mxu0 0.0
  %58 = vmatprep.subr.mxu0 0.0
  %59 = vmatpush1.msra.mxu0 0.0
  %60 = vmatprep.subr.mxu0 0.0
  %61 = vmatpush1.msra.mxu0 0.0
  %62 = vmatprep.subr.mxu0 0.0
  %63 = vmatpush1.msra.mxu0 0.0
  %64 = vmatprep.subr.mxu0 0.0
  %65 = vmatpush1.msra.mxu0 0.0
  %66 = vmatprep.subr.mxu0 0.0
  %67 = vmatpush1.msra.mxu0 0.0
  %68 = vmatprep.subr.mxu0 0.0
  %69 = vmatpush1.msra.mxu0 0.0
  %70 = vmatprep.subr.mxu0 0.0
  %71 = vmatpush1.msra.mxu0 0.0
  %72 = vmatprep.subr.mxu0 0.0
  %73 = vmatpush1.msra.mxu0 0.0
  %74 = vmatprep.subr.mxu0 0.0
  %75 = vmatpush1.msra.mxu0 0.0
  %76 = vmatprep.subr.mxu0 0.0
  %77 = vmatpush1.msra.mxu0 0.0
  %78 = vmatprep.subr.mxu0 0.0
  %79 = vmatpush1.msra.mxu0 0.0
  %80 = vmatprep.subr.mxu0 0.0
  %81 = vmatpush1.msra.mxu0 0.0
  %82 = vmatprep.subr.mxu0 0.0
  %83 = vmatpush1.msra.mxu0 0.0
  %84 = vmatprep.subr.mxu0 0.0
  %85 = vmatpush1.msra.mxu0 0.0
  %86 = vmatprep.subr.mxu0 0.0
  %87 = vmatpush1.msra.mxu0 0.0
  %88 = vmatprep.subr.mxu0 0.0
  %89 = vmatpush1.msra.mxu0 0.0
  %90 = vmatprep.subr.mxu0 0.0
  %91 = vmatpush1.msra.mxu0 0.0
  %92 = vmatprep.subr.mxu0 0.0
  %93 = vmatpush1.msra.mxu0 0.0
  %94 = vmatprep.subr.mxu0 0.0
  %95 = vmatpush1.msra.mxu0 0.0
  %96 = vmatprep.subr.mxu0 0.0
  %97 = vmatpush1.msra.mxu0 0.0
  %98 = vmatprep.subr.mxu0 0.0
  %99 = vmatpush1.msra.mxu0 0.0
  %100 = vmatprep.subr.mxu0 0.0
  %101 = vmatpush1.msra.mxu0 0.0
  %102 = vmatprep.subr.mxu0 0.0
  %103 = vmatpush1.msra.mxu0 0.0
  %104 = vmatprep.subr.mxu0 0.0
  %105 = vmatpush1.msra.mxu0 0.0
  %106 = vmatprep.subr.mxu0 0.0
  %107 = vmatpush1.msra.mxu0 0.0
  %108 = vmatprep.mubr.f32.mxu0 0.0
  %109 = vmatmul.mubr.f32.gmra.mrb[0].mxu0 %v42
  %v110 = vpop.f32.mrb[0].mxu0
  %v111 = vadd.f32 %v38, %v110
  %v112 = vpop.f32.mrb[0].mxu0
  %113 = vdwg.mxu0
  %v114 = vmax.f32 %v111, 0.0
  %v117 = vunpack.c.l.s4 1966171168
  %v118 = vunpack.c.0.s8 %v117
  %v119 = vlaneseq
  %v120 = vshrl.u32 %v119, 7
  %v121 = vsub.s32 %v118, %v120
  %v122 = vrot.slane %v114, %v121
  %v123 = vcombine.high %v122, %v122
  %v125 = vunpack.c.l.s4 1966171168
  %v126 = vunpack.c.0.s8 %v125
  %v127 = vlaneseq
  %v128 = vshrl.u32 %v127, 7
  %v129 = vsub.s32 %v126, %v128
  %v130 = vrot.slane %v122, %v129
  %v132 = vunpack.c.l.s4 1966171168
  %v133 = vunpack.c.0.s8 %v132
  %v134 = vlaneseq
  %v135 = vshrl.u32 %v134, 7
  %v136 = vsub.s32 %v133, %v135
  %v137 = vrot.slane %v123, %v136
  %v140 = vlaneseq
  %v141 = vshrl.u32 %v140, 7
  %v142 = vsub.s32 0, %v141
  %v143 = vrot.slane %v130, %v142
  %v144 = vlaneseq
  %v145 = vshrl.u32 %v144, 7
  %v146 = vsub.s32 0, %v145
  %v147 = vrot.slane %v137, %v146
  %148 = vrot.lane.b32.xlu0 %v143, 96
  %v149 = vpop.permute.xlu0 %148
  %150 = vrot.lane.b32.xlu0 %v147, 96
  %v151 = vpop.permute.xlu0 %150
  %154 = vrot.lane.b32.xlu0 %v143, 64
  %v155 = vpop.permute.xlu0 %154
  %156 = vrot.lane.b32.xlu0 %v147, 64
  %v157 = vpop.permute.xlu0 %156
  %160 = vrot.lane.b32.xlu0 %v143, 32
  %v161 = vpop.permute.xlu0 %160
  %162 = vrot.lane.b32.xlu0 %v147, 32
  %v163 = vpop.permute.xlu0 %162
  %vm166 = vcmask 1040384
  %v167 = vsel %vm166, %v130, %v149
  %v168 = vsel %vm166, %v137, %v151
  %vm169 = vcmask 1041408
  %v170 = vsel %vm169, %v167, %v155
  %v171 = vsel %vm169, %v168, %v157
  %vm172 = vcmask 1042432
  %v173 = vsel %vm172, %v170, %v161
  %v174 = vsel %vm172, %v171, %v163
  %v175 = vld [vmem:[%s4] sm:$0x1]
  %v176 = vld [vmem:[%s5] sm:$0x1]
  %v177 = vld [vmem:[%s3] sm:$0xff]
  %v178 = vld [vmem:[%s3 + $0x8] sm:$0xff]
  %v179 = vld [vmem:[%s3 + $0x10] sm:$0xff]
  %v180 = vld [vmem:[%s3 + $0x18] sm:$0xff]
  %v183 = vcombine.low %v173, %v174
  %vm184 = vcmask 261120
  %v185 = vsel %vm184, %v183, 0
  %187 = vmatprep.subr.mxu0 0.0
  %188 = vmatpush1.msra.mxu0 %v177
  %189 = vmatprep.subr.mxu0 0.0
  %190 = vmatpush1.msra.mxu0 %v178
  %191 = vmatprep.subr.mxu0 0.0
  %192 = vmatpush1.msra.mxu0 %v179
  %193 = vmatprep.subr.mxu0 0.0
  %194 = vmatpush1.msra.mxu0 %v180
  %195 = vmatprep.subr.mxu0 0.0
  %196 = vmatpush1.msra.mxu0 0.0
  %197 = vmatprep.subr.mxu0 0.0
  %198 = vmatpush1.msra.mxu0 0.0
  %199 = vmatprep.subr.mxu0 0.0
  %200 = vmatpush1.msra.mxu0 0.0
  %201 = vmatprep.subr.mxu0 0.0
  %202 = vmatpush1.msra.mxu0 0.0
  %203 = vmatprep.subr.mxu0 0.0
  %204 = vmatpush1.msra.mxu0 0.0
  %205 = vmatprep.subr.mxu0 0.0
  %206 = vmatpush1.msra.mxu0 0.0
  %207 = vmatprep.subr.mxu0 0.0
  %208 = vmatpush1.msra.mxu0 0.0
  %209 = vmatprep.subr.mxu0 0.0
  %210 = vmatpush1.msra.mxu0 0.0
  %211 = vmatprep.subr.mxu0 0.0
  %212 = vmatpush1.msra.mxu0 0.0
  %213 = vmatprep.subr.mxu0 0.0
  %214 = vmatpush1.msra.mxu0 0.0
  %215 = vmatprep.subr.mxu0 0.0
  %216 = vmatpush1.msra.mxu0 0.0
  %217 = vmatprep.subr.mxu0 0.0
  %218 = vmatpush1.msra.mxu0 0.0
  %219 = vmatprep.subr.mxu0 0.0
  %220 = vmatpush1.msra.mxu0 0.0
  %221 = vmatprep.subr.mxu0 0.0
  %222 = vmatpush1.msra.mxu0 0.0
  %223 = vmatprep.subr.mxu0 0.0
  %224 = vmatpush1.msra.mxu0 0.0
  %225 = vmatprep.subr.mxu0 0.0
  %226 = vmatpush1.msra.mxu0 0.0
  %227 = vmatprep.subr.mxu0 0.0
  %228 = vmatpush1.msra.mxu0 0.0
  %229 = vmatprep.subr.mxu0 0.0
  %230 = vmatpush1.msra.mxu0 0.0
  %231 = vmatprep.subr.mxu0 0.0
  %232 = vmatpush1.msra.mxu0 0.0
  %233 = vmatprep.subr.mxu0 0.0
  %234 = vmatpush1.msra.mxu0 0.0
  %235 = vmatprep.subr.mxu0 0.0
  %236 = vmatpush1.msra.mxu0 0.0
  %237 = vmatprep.subr.mxu0 0.0
  %238 = vmatpush1.msra.mxu0 0.0
  %239 = vmatprep.subr.mxu0 0.0
  %240 = vmatpush1.msra.mxu0 0.0
  %241 = vmatprep.subr.mxu0 0.0
  %242 = vmatpush1.msra.mxu0 0.0
  %243 = vmatprep.subr.mxu0 0.0
  %244 = vmatpush1.msra.mxu0 0.0
  %245 = vmatprep.subr.mxu0 0.0
  %246 = vmatpush1.msra.mxu0 0.0
  %247 = vmatprep.subr.mxu0 0.0
  %248 = vmatpush1.msra.mxu0 0.0
  %249 = vmatprep.subr.mxu0 0.0
  %250 = vmatpush1.msra.mxu0 0.0
  %251 = vmatprep.mubr.f32.mxu0 0.0
  %252 = vmatmul.mubr.f32.gmra.mrb[0].mxu0 %v185
  %v253 = vpop.f32.mrb[0].mxu0
  %v254 = vadd.f32 0.0, %v253
  %v255 = vpop.f32.mrb[0].mxu0
  %256 = vdwg.mxu0
  %v258 = vcombine.high %v254, %v254
  %s259 = scalar_lea.vmem %s3, 32
  %v260 = vld [vmem:[%s259] sm:$0xff]
  %v261 = vld [vmem:[%s259 + $0x8] sm:$0xff]
  %v262 = vld [vmem:[%s259 + $0x10] sm:$0xff]
  %v263 = vld [vmem:[%s259 + $0x18] sm:$0xff]
  %264 = vmatprep.subr.mxu0 0.0
  %265 = vmatpush1.msra.mxu0 %v260
  %266 = vmatprep.subr.mxu0 0.0
  %267 = vmatpush1.msra.mxu0 %v261
  %268 = vmatprep.subr.mxu0 0.0
  %269 = vmatpush1.msra.mxu0 %v262
  %270 = vmatprep.subr.mxu0 0.0
  %271 = vmatpush1.msra.mxu0 %v263
  %272 = vmatprep.subr.mxu0 0.0
  %273 = vmatpush1.msra.mxu0 0.0
  %274 = vmatprep.subr.mxu0 0.0
  %275 = vmatpush1.msra.mxu0 0.0
  %276 = vmatprep.subr.mxu0 0.0
  %277 = vmatpush1.msra.mxu0 0.0
  %278 = vmatprep.subr.mxu0 0.0
  %279 = vmatpush1.msra.mxu0 0.0
  %280 = vmatprep.subr.mxu0 0.0
  %281 = vmatpush1.msra.mxu0 0.0
  %282 = vmatprep.subr.mxu0 0.0
  %283 = vmatpush1.msra.mxu0 0.0
  %284 = vmatprep.subr.mxu0 0.0
  %285 = vmatpush1.msra.mxu0 0.0
  %286 = vmatprep.subr.mxu0 0.0
  %287 = vmatpush1.msra.mxu0 0.0
  %288 = vmatprep.subr.mxu0 0.0
  %289 = vmatpush1.msra.mxu0 0.0
  %290 = vmatprep.subr.mxu0 0.0
  %291 = vmatpush1.msra.mxu0 0.0
  %292 = vmatprep.subr.mxu0 0.0
  %293 = vmatpush1.msra.mxu0 0.0
  %294 = vmatprep.subr.mxu0 0.0
  %295 = vmatpush1.msra.mxu0 0.0
  %296 = vmatprep.subr.mxu0 0.0
  %297 = vmatpush1.msra.mxu0 0.0
  %298 = vmatprep.subr.mxu0 0.0
  %299 = vmatpush1.msra.mxu0 0.0
  %300 = vmatprep.subr.mxu0 0.0
  %301 = vmatpush1.msra.mxu0 0.0
  %302 = vmatprep.subr.mxu0 0.0
  %303 = vmatpush1.msra.mxu0 0.0
  %304 = vmatprep.subr.mxu0 0.0
  %305 = vmatpush1.msra.mxu0 0.0
  %306 = vmatprep.subr.mxu0 0.0
  %307 = vmatpush1.msra.mxu0 0.0
  %308 = vmatprep.subr.mxu0 0.0
  %309 = vmatpush1.msra.mxu0 0.0
  %310 = vmatprep.subr.mxu0 0.0
  %311 = vmatpush1.msra.mxu0 0.0
  %312 = vmatprep.subr.mxu0 0.0
  %313 = vmatpush1.msra.mxu0 0.0
  %314 = vmatprep.subr.mxu0 0.0
  %315 = vmatpush1.msra.mxu0 0.0
  %316 = vmatprep.subr.mxu0 0.0
  %317 = vmatpush1.msra.mxu0 0.0
  %318 = vmatprep.subr.mxu0 0.0
  %319 = vmatpush1.msra.mxu0 0.0
  %320 = vmatprep.subr.mxu0 0.0
  %321 = vmatpush1.msra.mxu0 0.0
  %322 = vmatprep.subr.mxu0 0.0
  %323 = vmatpush1.msra.mxu0 0.0
  %324 = vmatprep.subr.mxu0 0.0
  %325 = vmatpush1.msra.mxu0 0.0
  %326 = vmatprep.subr.mxu0 0.0
  %327 = vmatpush1.msra.mxu0 0.0
  %328 = vmatprep.mubr.f32.mxu0 0.0
  %329 = vmatmul.mubr.f32.gmra.mrb[0].mxu0 %v185
  %v330 = vpop.f32.mrb[0].mxu0
  %v331 = vadd.f32 0.0, %v330
  %v332 = vpop.f32.mrb[0].mxu0
  %333 = vdwg.mxu0
  %v335 = vcombine.high %v331, %v331
  %s337 = scalar_lea.vmem %s3, 64
  %v338 = vld [vmem:[%s337] sm:$0xff]
  %v339 = vld [vmem:[%s337 + $0x8] sm:$0xff]
  %v340 = vld [vmem:[%s337 + $0x10] sm:$0xff]
  %v341 = vld [vmem:[%s337 + $0x18] sm:$0xff]
  %342 = vmatprep.subr.mxu0 0.0
  %343 = vmatpush1.msra.mxu0 %v338
  %344 = vmatprep.subr.mxu0 0.0
  %345 = vmatpush1.msra.mxu0 %v339
  %346 = vmatprep.subr.mxu0 0.0
  %347 = vmatpush1.msra.mxu0 %v340
  %348 = vmatprep.subr.mxu0 0.0
  %349 = vmatpush1.msra.mxu0 %v341
  %350 = vmatprep.subr.mxu0 0.0
  %351 = vmatpush1.msra.mxu0 0.0
  %352 = vmatprep.subr.mxu0 0.0
  %353 = vmatpush1.msra.mxu0 0.0
  %354 = vmatprep.subr.mxu0 0.0
  %355 = vmatpush1.msra.mxu0 0.0
  %356 = vmatprep.subr.mxu0 0.0
  %357 = vmatpush1.msra.mxu0 0.0
  %358 = vmatprep.subr.mxu0 0.0
  %359 = vmatpush1.msra.mxu0 0.0
  %360 = vmatprep.subr.mxu0 0.0
  %361 = vmatpush1.msra.mxu0 0.0
  %362 = vmatprep.subr.mxu0 0.0
  %363 = vmatpush1.msra.mxu0 0.0
  %364 = vmatprep.subr.mxu0 0.0
  %365 = vmatpush1.msra.mxu0 0.0
  %366 = vmatprep.subr.mxu0 0.0
  %367 = vmatpush1.msra.mxu0 0.0
  %368 = vmatprep.subr.mxu0 0.0
  %369 = vmatpush1.msra.mxu0 0.0
  %370 = vmatprep.subr.mxu0 0.0
  %371 = vmatpush1.msra.mxu0 0.0
  %372 = vmatprep.subr.mxu0 0.0
  %373 = vmatpush1.msra.mxu0 0.0
  %374 = vmatprep.subr.mxu0 0.0
  %375 = vmatpush1.msra.mxu0 0.0
  %376 = vmatprep.subr.mxu0 0.0
  %377 = vmatpush1.msra.mxu0 0.0
  %378 = vmatprep.subr.mxu0 0.0
  %379 = vmatpush1.msra.mxu0 0.0
  %380 = vmatprep.subr.mxu0 0.0
  %381 = vmatpush1.msra.mxu0 0.0
  %382 = vmatprep.subr.mxu0 0.0
  %383 = vmatpush1.msra.mxu0 0.0
  %384 = vmatprep.subr.mxu0 0.0
  %385 = vmatpush1.msra.mxu0 0.0
  %386 = vmatprep.subr.mxu0 0.0
  %387 = vmatpush1.msra.mxu0 0.0
  %388 = vmatprep.subr.mxu0 0.0
  %389 = vmatpush1.msra.mxu0 0.0
  %390 = vmatprep.subr.mxu0 0.0
  %391 = vmatpush1.msra.mxu0 0.0
  %392 = vmatprep.subr.mxu0 0.0
  %393 = vmatpush1.msra.mxu0 0.0
  %394 = vmatprep.subr.mxu0 0.0
  %395 = vmatpush1.msra.mxu0 0.0
  %396 = vmatprep.subr.mxu0 0.0
  %397 = vmatpush1.msra.mxu0 0.0
  %398 = vmatprep.subr.mxu0 0.0
  %399 = vmatpush1.msra.mxu0 0.0
  %400 = vmatprep.subr.mxu0 0.0
  %401 = vmatpush1.msra.mxu0 0.0
  %402 = vmatprep.subr.mxu0 0.0
  %403 = vmatpush1.msra.mxu0 0.0
  %404 = vmatprep.subr.mxu0 0.0
  %405 = vmatpush1.msra.mxu0 0.0
  %406 = vmatprep.mubr.f32.mxu0 0.0
  %407 = vmatmul.mubr.f32.gmra.mrb[0].mxu0 %v185
  %v408 = vpop.f32.mrb[0].mxu0
  %v409 = vadd.f32 0.0, %v408
  %v410 = vpop.f32.mrb[0].mxu0
  %411 = vdwg.mxu0
  %v413 = vcombine.high %v409, %v409
  %s415 = scalar_lea.vmem %s3, 96
  %v416 = vld [vmem:[%s415] sm:$0xff]
  %v417 = vld [vmem:[%s415 + $0x8] sm:$0xff]
  %v418 = vld [vmem:[%s415 + $0x10] sm:$0xff]
  %v419 = vld [vmem:[%s415 + $0x18] sm:$0xff]
  %420 = vmatprep.subr.mxu0 0.0
  %421 = vmatpush1.msra.mxu0 %v416
  %422 = vmatprep.subr.mxu0 0.0
  %423 = vmatpush1.msra.mxu0 %v417
  %424 = vmatprep.subr.mxu0 0.0
  %425 = vmatpush1.msra.mxu0 %v418
  %426 = vmatprep.subr.mxu0 0.0
  %427 = vmatpush1.msra.mxu0 %v419
  %428 = vmatprep.subr.mxu0 0.0
  %429 = vmatpush1.msra.mxu0 0.0
  %430 = vmatprep.subr.mxu0 0.0
  %431 = vmatpush1.msra.mxu0 0.0
  %432 = vmatprep.subr.mxu0 0.0
  %433 = vmatpush1.msra.mxu0 0.0
  %434 = vmatprep.subr.mxu0 0.0
  %435 = vmatpush1.msra.mxu0 0.0
  %436 = vmatprep.subr.mxu0 0.0
  %437 = vmatpush1.msra.mxu0 0.0
  %438 = vmatprep.subr.mxu0 0.0
  %439 = vmatpush1.msra.mxu0 0.0
  %440 = vmatprep.subr.mxu0 0.0
  %441 = vmatpush1.msra.mxu0 0.0
  %442 = vmatprep.subr.mxu0 0.0
  %443 = vmatpush1.msra.mxu0 0.0
  %444 = vmatprep.subr.mxu0 0.0
  %445 = vmatpush1.msra.mxu0 0.0
  %446 = vmatprep.subr.mxu0 0.0
  %447 = vmatpush1.msra.mxu0 0.0
  %448 = vmatprep.subr.mxu0 0.0
  %449 = vmatpush1.msra.mxu0 0.0
  %450 = vmatprep.subr.mxu0 0.0
  %451 = vmatpush1.msra.mxu0 0.0
  %452 = vmatprep.subr.mxu0 0.0
  %453 = vmatpush1.msra.mxu0 0.0
  %454 = vmatprep.subr.mxu0 0.0
  %455 = vmatpush1.msra.mxu0 0.0
  %456 = vmatprep.subr.mxu0 0.0
  %457 = vmatpush1.msra.mxu0 0.0
  %458 = vmatprep.subr.mxu0 0.0
  %459 = vmatpush1.msra.mxu0 0.0
  %460 = vmatprep.subr.mxu0 0.0
  %461 = vmatpush1.msra.mxu0 0.0
  %462 = vmatprep.subr.mxu0 0.0
  %463 = vmatpush1.msra.mxu0 0.0
  %464 = vmatprep.subr.mxu0 0.0
  %465 = vmatpush1.msra.mxu0 0.0
  %466 = vmatprep.subr.mxu0 0.0
  %467 = vmatpush1.msra.mxu0 0.0
  %468 = vmatprep.subr.mxu0 0.0
  %469 = vmatpush1.msra.mxu0 0.0
  %470 = vmatprep.subr.mxu0 0.0
  %471 = vmatpush1.msra.mxu0 0.0
  %472 = vmatprep.subr.mxu0 0.0
  %473 = vmatpush1.msra.mxu0 0.0
  %474 = vmatprep.subr.mxu0 0.0
  %475 = vmatpush1.msra.mxu0 0.0
  %476 = vmatprep.subr.mxu0 0.0
  %477 = vmatpush1.msra.mxu0 0.0
  %478 = vmatprep.subr.mxu0 0.0
  %479 = vmatpush1.msra.mxu0 0.0
  %480 = vmatprep.subr.mxu0 0.0
  %481 = vmatpush1.msra.mxu0 0.0
  %482 = vmatprep.subr.mxu0 0.0
  %483 = vmatpush1.msra.mxu0 0.0
  %484 = vmatprep.mubr.f32.mxu0 0.0
  %485 = vmatmul.mubr.f32.gmra.mrb[0].mxu0 %v185
  %v486 = vpop.f32.mrb[0].mxu0
  %v487 = vadd.f32 0.0, %v486
  %v488 = vpop.f32.mrb[0].mxu0
  %489 = vdwg.mxu0
  %v491 = vcombine.high %v487, %v487
  %v492 = vrot.slane %v487, 7
  %v493 = vrot.slane %v491, 7
  %v496 = vsel %vm166, 0.0, %v492
  %v497 = vsel %vm166, 0.0, %v493
  %v498 = vrot.slane %v254, 1
  %v499 = vrot.slane %v258, 1
  %v502 = vsel %vm172, %v498, 0.0
  %v503 = vsel %vm172, %v499, 0.0
  %v504 = vadd.f32 %v331, %v496
  %v505 = vadd.f32 %v335, %v497
  %v506 = vadd.f32 %v409, %v502
  %v507 = vadd.f32 %v413, %v503
  %v511 = vunpack.c.l.s4 1966171168
  %v512 = vunpack.c.0.s8 %v511
  %v513 = vlaneseq
  %v514 = vshrl.u32 %v513, 7
  %v515 = vsub.s32 %v512, %v514
  %v516 = vrot.slane %v504, %v515
  %v517 = vcombine.high %v516, %v516
  %v519 = vunpack.c.l.s4 1966171168
  %v520 = vunpack.c.0.s8 %v519
  %v521 = vlaneseq
  %v522 = vshrl.u32 %v521, 7
  %v523 = vsub.s32 %v520, %v522
  %v524 = vrot.slane %v516, %v523
  %v526 = vunpack.c.l.s4 1966171168
  %v527 = vunpack.c.0.s8 %v526
  %v528 = vlaneseq
  %v529 = vshrl.u32 %v528, 7
  %v530 = vsub.s32 %v527, %v529
  %v531 = vrot.slane %v517, %v530
  %v532 = vcombine.high %v524, %v524
  %v533 = vcombine.high %v531, %v531
  %v535 = vunpack.c.l.s4 1966171168
  %v536 = vunpack.c.0.s8 %v535
  %v537 = vlaneseq
  %v538 = vshrl.u32 %v537, 7
  %v539 = vsub.s32 %v536, %v538
  %v540 = vrot.slane %v505, %v539
  %v541 = vcombine.high %v540, %v540
  %v543 = vunpack.c.l.s4 1966171168
  %v544 = vunpack.c.0.s8 %v543
  %v545 = vlaneseq
  %v546 = vshrl.u32 %v545, 7
  %v547 = vsub.s32 %v544, %v546
  %v548 = vrot.slane %v540, %v547
  %v550 = vunpack.c.l.s4 1966171168
  %v551 = vunpack.c.0.s8 %v550
  %v552 = vlaneseq
  %v553 = vshrl.u32 %v552, 7
  %v554 = vsub.s32 %v551, %v553
  %v555 = vrot.slane %v541, %v554
  %v556 = vcombine.high %v548, %v548
  %v557 = vcombine.high %v555, %v555
  %v569 = vunpack.c.l.s4 1966171168
  %v570 = vunpack.c.0.s8 %v569
  %v571 = vlaneseq
  %v572 = vshrl.u32 %v571, 7
  %v573 = vsub.s32 %v570, %v572
  %v574 = vrot.slane %v506, %v573
  %v575 = vcombine.high %v574, %v574
  %v577 = vunpack.c.l.s4 1966171168
  %v578 = vunpack.c.0.s8 %v577
  %v579 = vlaneseq
  %v580 = vshrl.u32 %v579, 7
  %v581 = vsub.s32 %v578, %v580
  %v582 = vrot.slane %v574, %v581
  %v584 = vunpack.c.l.s4 1966171168
  %v585 = vunpack.c.0.s8 %v584
  %v586 = vlaneseq
  %v587 = vshrl.u32 %v586, 7
  %v588 = vsub.s32 %v585, %v587
  %v589 = vrot.slane %v575, %v588
  %v590 = vcombine.high %v582, %v582
  %v591 = vcombine.high %v589, %v589
  %v593 = vunpack.c.l.s4 1966171168
  %v594 = vunpack.c.0.s8 %v593
  %v595 = vlaneseq
  %v596 = vshrl.u32 %v595, 7
  %v597 = vsub.s32 %v594, %v596
  %v598 = vrot.slane %v507, %v597
  %v599 = vcombine.high %v598, %v598
  %v601 = vunpack.c.l.s4 1966171168
  %v602 = vunpack.c.0.s8 %v601
  %v603 = vlaneseq
  %v604 = vshrl.u32 %v603, 7
  %v605 = vsub.s32 %v602, %v604
  %v606 = vrot.slane %v598, %v605
  %v608 = vunpack.c.l.s4 1966171168
  %v609 = vunpack.c.0.s8 %v608
  %v610 = vlaneseq
  %v611 = vshrl.u32 %v610, 7
  %v612 = vsub.s32 %v609, %v611
  %v613 = vrot.slane %v599, %v612
  %v614 = vcombine.high %v606, %v606
  %v615 = vcombine.high %v613, %v613
  %v616 = vlaneseq
  %v617 = vshrl.u32 %v616, 7
  %v618 = vsub.s32 0, %v617
  %v619 = vrot.slane %v582, %v618
  %v620 = vlaneseq
  %v621 = vshrl.u32 %v620, 7
  %v622 = vsub.s32 0, %v621
  %v623 = vrot.slane %v589, %v622
  %v624 = vlaneseq
  %v625 = vshrl.u32 %v624, 7
  %v626 = vsub.s32 0, %v625
  %v627 = vrot.slane %v590, %v626
  %v628 = vlaneseq
  %v629 = vshrl.u32 %v628, 7
  %v630 = vsub.s32 0, %v629
  %v631 = vrot.slane %v591, %v630
  %v632 = vlaneseq
  %v633 = vshrl.u32 %v632, 7
  %v634 = vsub.s32 0, %v633
  %v635 = vrot.slane %v606, %v634
  %v636 = vlaneseq
  %v637 = vshrl.u32 %v636, 7
  %v638 = vsub.s32 0, %v637
  %v639 = vrot.slane %v613, %v638
  %v640 = vlaneseq
  %v641 = vshrl.u32 %v640, 7
  %v642 = vsub.s32 0, %v641
  %v643 = vrot.slane %v614, %v642
  %v644 = vlaneseq
  %v645 = vshrl.u32 %v644, 7
  %v646 = vsub.s32 0, %v645
  %v647 = vrot.slane %v615, %v646
  %v656 = vsel %vm166, %v524, %v619
  %v657 = vsel %vm166, %v531, %v623
  %v658 = vsel %vm166, %v532, %v627
  %v659 = vsel %vm166, %v533, %v631
  %v660 = vsel %vm166, %v548, %v635
  %v661 = vsel %vm166, %v555, %v639
  %v662 = vsel %vm166, %v556, %v643
  %v663 = vsel %vm166, %v557, %v647
  %v672 = vcombine.low %v656, %v657
  %v673 = vcombine.low %v658, %v659
  %v675 = vunpack.c.l.s4 1983009808
  %v676 = vunpack.c.0.s8 %v675
  %v677 = vlaneseq
  %v678 = vshrl.u32 %v677, 7
  %v679 = vsub.s32 %v676, %v678
  %v680 = vrot.slane %v672, %v679
  %v682 = vunpack.c.l.s4 1983009808
  %v683 = vunpack.c.0.s8 %v682
  %v684 = vlaneseq
  %v685 = vshrl.u32 %v684, 7
  %v686 = vsub.s32 %v683, %v685
  %v687 = vrot.slane %v673, %v686
  %v688 = vcombine.low %v680, %v687
  %v689 = vcombine.low %v660, %v661
  %v690 = vcombine.low %v662, %v663
  %v692 = vunpack.c.l.s4 1983009808
  %v693 = vunpack.c.0.s8 %v692
  %v694 = vlaneseq
  %v695 = vshrl.u32 %v694, 7
  %v696 = vsub.s32 %v693, %v695
  %v697 = vrot.slane %v689, %v696
  %v699 = vunpack.c.l.s4 1983009808
  %v700 = vunpack.c.0.s8 %v699
  %v701 = vlaneseq
  %v702 = vshrl.u32 %v701, 7
  %v703 = vsub.s32 %v700, %v702
  %v704 = vrot.slane %v690, %v703
  %v705 = vcombine.low %v697, %v704
  %vm708 = vcmask 130048
  %v709 = vsel %vm708, %v688, 0.0
  %v710 = vsel %vm708, %v705, 0.0
  %v711 = vadd.f32 %v709, %v710
  %v712 = vrot.slane %v711, 4
  %v713 = vadd.f32 %v711, %v712
  %v714 = vrot.slane %v713, 2
  %v715 = vadd.f32 %v713, %v714
  %v716 = vrot.slane %v715, 1
  %v717 = vadd.f32 %v715, %v716
  %v718 = vmul.f32 %v656, %v656
  %v719 = vmul.f32 %v657, %v657
  %v720 = vmul.f32 %v658, %v658
  %v721 = vmul.f32 %v659, %v659
  %v722 = vmul.f32 %v660, %v660
  %v723 = vmul.f32 %v661, %v661
  %v724 = vmul.f32 %v662, %v662
  %v725 = vmul.f32 %v663, %v663
  %v734 = vcombine.low %v718, %v719
  %v735 = vcombine.low %v720, %v721
  %v737 = vunpack.c.l.s4 1983009808
  %v738 = vunpack.c.0.s8 %v737
  %v739 = vlaneseq
  %v740 = vshrl.u32 %v739, 7
  %v741 = vsub.s32 %v738, %v740
  %v742 = vrot.slane %v734, %v741
  %v744 = vunpack.c.l.s4 1983009808
  %v745 = vunpack.c.0.s8 %v744
  %v746 = vlaneseq
  %v747 = vshrl.u32 %v746, 7
  %v748 = vsub.s32 %v745, %v747
  %v749 = vrot.slane %v735, %v748
  %v750 = vcombine.low %v742, %v749
  %v751 = vcombine.low %v722, %v723
  %v752 = vcombine.low %v724, %v725
  %v754 = vunpack.c.l.s4 1983009808
  %v755 = vunpack.c.0.s8 %v754
  %v756 = vlaneseq
  %v757 = vshrl.u32 %v756, 7
  %v758 = vsub.s32 %v755, %v757
  %v759 = vrot.slane %v751, %v758
  %v761 = vunpack.c.l.s4 1983009808
  %v762 = vunpack.c.0.s8 %v761
  %v763 = vlaneseq
  %v764 = vshrl.u32 %v763, 7
  %v765 = vsub.s32 %v762, %v764
  %v766 = vrot.slane %v752, %v765
  %v767 = vcombine.low %v759, %v766
  %v770 = vsel %vm708, %v750, 0.0
  %v771 = vsel %vm708, %v767, 0.0
  %v772 = vadd.f32 %v770, %v771
  %v773 = vrot.slane %v772, 4
  %v774 = vadd.f32 %v772, %v773
  %v775 = vrot.slane %v774, 2
  %v776 = vadd.f32 %v774, %v775
  %v777 = vrot.slane %v776, 1
  %v778 = vadd.f32 %v776, %v777
  %v779 = vmul.f32 %v717, 0.0625
  %v780 = vmul.f32 %v778, 0.0625
  %v781 = vmul.f32 %v779, %v779
  %v782 = vsub.f32 %v780, %v781
  %v783 = vmax.f32 %v782, 0.0
  %v784 = vadd.f32 %v783, 1e-05
  %v785 = vrsqrt.pop %v784
  %v786 = vmul.f32 %v175, %v785
  %v787 = vmul.f32 %v779, %v786
  %v788 = vsub.f32 %v176, %v787
  %v790 = vlaneseq
  %v791 = vshrl.u32 %v790, 7
  %v792 = vsub.s32 0, %v791
  %v793 = vrot.slane %v786, %v792
  %v794 = vcombine.high %v793, %v793
  %v796 = vunpack.c.l.s4 1983009808
  %v797 = vunpack.c.0.s8 %v796
  %v798 = vlaneseq
  %v799 = vshrl.u32 %v798, 7
  %v800 = vsub.s32 %v797, %v799
  %v801 = vrot.slane %v793, %v800
  %v803 = vunpack.c.l.s4 1983009808
  %v804 = vunpack.c.0.s8 %v803
  %v805 = vlaneseq
  %v806 = vshrl.u32 %v805, 7
  %v807 = vsub.s32 %v804, %v806
  %v808 = vrot.slane %v794, %v807
  %v809 = vcombine.high %v801, %v801
  %v810 = vcombine.high %v808, %v808
  %v815 = vmul.f32 %v656, %v801
  %v816 = vmul.f32 %v657, %v809
  %v817 = vmul.f32 %v658, %v808
  %v818 = vmul.f32 %v659, %v810
  %v819 = vmul.f32 %v660, %v801
  %v820 = vmul.f32 %v661, %v809
  %v821 = vmul.f32 %v662, %v808
  %v822 = vmul.f32 %v663, %v810
  %v824 = vlaneseq
  %v825 = vshrl.u32 %v824, 7
  %v826 = vsub.s32 0, %v825
  %v827 = vrot.slane %v788, %v826
  %v828 = vcombine.high %v827, %v827
  %v830 = vunpack.c.l.s4 1983009808
  %v831 = vunpack.c.0.s8 %v830
  %v832 = vlaneseq
  %v833 = vshrl.u32 %v832, 7
  %v834 = vsub.s32 %v831, %v833
  %v835 = vrot.slane %v827, %v834
  %v837 = vunpack.c.l.s4 1983009808
  %v838 = vunpack.c.0.s8 %v837
  %v839 = vlaneseq
  %v840 = vshrl.u32 %v839, 7
  %v841 = vsub.s32 %v838, %v840
  %v842 = vrot.slane %v828, %v841
  %v843 = vcombine.high %v835, %v835
  %v844 = vcombine.high %v842, %v842
  %v849 = vadd.f32 %v815, %v835
  %v850 = vadd.f32 %v816, %v843
  %v851 = vadd.f32 %v817, %v842
  %v852 = vadd.f32 %v818, %v844
  %v853 = vadd.f32 %v819, %v835
  %v854 = vadd.f32 %v820, %v843
  %v855 = vadd.f32 %v821, %v842
  %v856 = vadd.f32 %v822, %v844
  %v857 = vmax.f32 %v849, 0.0
  %v858 = vmax.f32 %v850, 0.0
  %v859 = vmax.f32 %v851, 0.0
  %v860 = vmax.f32 %v852, 0.0
  %v861 = vmax.f32 %v853, 0.0
  %v862 = vmax.f32 %v854, 0.0
  %v863 = vmax.f32 %v855, 0.0
  %v864 = vmax.f32 %v856, 0.0
  %v865 = vld [vmem:[%s6] sm:$0xf]
  %v866 = vld [vmem:[#allocation2] sm:$0x1]
  %v867 = vlaneseq
  %v868 = vshrl.u32 %v867, 7
  %v869 = vsub.s32 0, %v868
  %v870 = vrot.slane %v865, %v869
  %v872 = vcombine.high %v870, %v870
  %v874 = vunpack.c.l.s4 1983009808
  %v875 = vunpack.c.0.s8 %v874
  %v876 = vlaneseq
  %v877 = vshrl.u32 %v876, 7
  %v878 = vsub.s32 %v875, %v877
  %v879 = vrot.slane %v870, %v878
  %v881 = vunpack.c.l.s4 1983009808
  %v882 = vunpack.c.0.s8 %v881
  %v883 = vlaneseq
  %v884 = vshrl.u32 %v883, 7
  %v885 = vsub.s32 %v882, %v884
  %v886 = vrot.slane %v872, %v885
  %v887 = vcombine.high %v879, %v879
  %v888 = vcombine.high %v886, %v886
  %v893 = vmul.f32 %v857, %v879
  %v894 = vmul.f32 %v858, %v887
  %v895 = vmul.f32 %v859, %v886
  %v896 = vmul.f32 %v860, %v888
  %v897 = vmul.f32 %v861, %v879
  %v898 = vmul.f32 %v862, %v887
  %v899 = vmul.f32 %v863, %v886
  %v900 = vmul.f32 %v864, %v888
  %v909 = vcombine.low %v893, %v894
  %v910 = vcombine.low %v895, %v896
  %v912 = vunpack.c.l.s4 1983009808
  %v913 = vunpack.c.0.s8 %v912
  %v914 = vlaneseq
  %v915 = vshrl.u32 %v914, 7
  %v916 = vsub.s32 %v913, %v915
  %v917 = vrot.slane %v909, %v916
  %v919 = vunpack.c.l.s4 1983009808
  %v920 = vunpack.c.0.s8 %v919
  %v921 = vlaneseq
  %v922 = vshrl.u32 %v921, 7
  %v923 = vsub.s32 %v920, %v922
  %v924 = vrot.slane %v910, %v923
  %v925 = vcombine.low %v917, %v924
  %v926 = vcombine.low %v897, %v898
  %v927 = vcombine.low %v899, %v900
  %v929 = vunpack.c.l.s4 1983009808
  %v930 = vunpack.c.0.s8 %v929
  %v931 = vlaneseq
  %v932 = vshrl.u32 %v931, 7
  %v933 = vsub.s32 %v930, %v932
  %v934 = vrot.slane %v926, %v933
  %v936 = vunpack.c.l.s4 1983009808
  %v937 = vunpack.c.0.s8 %v936
  %v938 = vlaneseq
  %v939 = vshrl.u32 %v938, 7
  %v940 = vsub.s32 %v937, %v939
  %v941 = vrot.slane %v927, %v940
  %v942 = vcombine.low %v934, %v941
  %v945 = vsel %vm708, %v925, 0.0
  %946 = vadd.xlane.f32.xlu0 %v945
  %v947 = vpop.xlane.xlu0 %946
  %v948 = vsel %vm708, %v942, 0.0
  %949 = vadd.xlane.f32.xlu0 %v948
  %v950 = vpop.xlane.xlu0 %949
  %v951 = vlaneseq
  %v952 = vshrl.u32 %v951, 7
  %v953 = vsub.s32 1, %v952
  %v954 = vrot.slane %v865, %v953
  %v956 = vcombine.high %v954, %v954
  %v958 = vunpack.c.l.s4 1983009808
  %v959 = vunpack.c.0.s8 %v958
  %v960 = vlaneseq
  %v961 = vshrl.u32 %v960, 7
  %v962 = vsub.s32 %v959, %v961
  %v963 = vrot.slane %v954, %v962
  %v965 = vunpack.c.l.s4 1983009808
  %v966 = vunpack.c.0.s8 %v965
  %v967 = vlaneseq
  %v968 = vshrl.u32 %v967, 7
  %v969 = vsub.s32 %v966, %v968
  %v970 = vrot.slane %v956, %v969
  %v971 = vcombine.high %v963, %v963
  %v972 = vcombine.high %v970, %v970
  %v977 = vmul.f32 %v857, %v963
  %v978 = vmul.f32 %v858, %v971
  %v979 = vmul.f32 %v859, %v970
  %v980 = vmul.f32 %v860, %v972
  %v981 = vmul.f32 %v861, %v963
  %v982 = vmul.f32 %v862, %v971
  %v983 = vmul.f32 %v863, %v970
  %v984 = vmul.f32 %v864, %v972
  %v993 = vcombine.low %v977, %v978
  %v994 = vcombine.low %v979, %v980
  %v996 = vunpack.c.l.s4 1983009808
  %v997 = vunpack.c.0.s8 %v996
  %v998 = vlaneseq
  %v999 = vshrl.u32 %v998, 7
  %v1000 = vsub.s32 %v997, %v999
  %v1001 = vrot.slane %v993, %v1000
  %v1003 = vunpack.c.l.s4 1983009808
  %v1004 = vunpack.c.0.s8 %v1003
  %v1005 = vlaneseq
  %v1006 = vshrl.u32 %v1005, 7
  %v1007 = vsub.s32 %v1004, %v1006
  %v1008 = vrot.slane %v994, %v1007
  %v1009 = vcombine.low %v1001, %v1008
  %v1010 = vcombine.low %v981, %v982
  %v1011 = vcombine.low %v983, %v984
  %v1013 = vunpack.c.l.s4 1983009808
  %v1014 = vunpack.c.0.s8 %v1013
  %v1015 = vlaneseq
  %v1016 = vshrl.u32 %v1015, 7
  %v1017 = vsub.s32 %v1014, %v1016
  %v1018 = vrot.slane %v1010, %v1017
  %v1020 = vunpack.c.l.s4 1983009808
  %v1021 = vunpack.c.0.s8 %v1020
  %v1022 = vlaneseq
  %v1023 = vshrl.u32 %v1022, 7
  %v1024 = vsub.s32 %v1021, %v1023
  %v1025 = vrot.slane %v1011, %v1024
  %v1026 = vcombine.low %v1018, %v1025
  %v1029 = vsel %vm708, %v1009, 0.0
  %1030 = vadd.xlane.f32.xlu0 %v1029
  %v1031 = vpop.xlane.xlu0 %1030
  %v1032 = vsel %vm708, %v1026, 0.0
  %1033 = vadd.xlane.f32.xlu0 %v1032
  %v1034 = vpop.xlane.xlu0 %1033
  %v1035 = vlaneseq
  %v1036 = vshrl.u32 %v1035, 7
  %v1037 = vsub.s32 2, %v1036
  %v1038 = vrot.slane %v865, %v1037
  %v1040 = vcombine.high %v1038, %v1038
  %v1042 = vunpack.c.l.s4 1983009808
  %v1043 = vunpack.c.0.s8 %v1042
  %v1044 = vlaneseq
  %v1045 = vshrl.u32 %v1044, 7
  %v1046 = vsub.s32 %v1043, %v1045
  %v1047 = vrot.slane %v1038, %v1046
  %v1049 = vunpack.c.l.s4 1983009808
  %v1050 = vunpack.c.0.s8 %v1049
  %v1051 = vlaneseq
  %v1052 = vshrl.u32 %v1051, 7
  %v1053 = vsub.s32 %v1050, %v1052
  %v1054 = vrot.slane %v1040, %v1053
  %v1055 = vcombine.high %v1047, %v1047
  %v1056 = vcombine.high %v1054, %v1054
  %v1061 = vmul.f32 %v857, %v1047
  %v1062 = vmul.f32 %v858, %v1055
  %v1063 = vmul.f32 %v859, %v1054
  %v1064 = vmul.f32 %v860, %v1056
  %v1065 = vmul.f32 %v861, %v1047
  %v1066 = vmul.f32 %v862, %v1055
  %v1067 = vmul.f32 %v863, %v1054
  %v1068 = vmul.f32 %v864, %v1056
  %v1077 = vcombine.low %v1061, %v1062
  %v1078 = vcombine.low %v1063, %v1064
  %v1080 = vunpack.c.l.s4 1983009808
  %v1081 = vunpack.c.0.s8 %v1080
  %v1082 = vlaneseq
  %v1083 = vshrl.u32 %v1082, 7
  %v1084 = vsub.s32 %v1081, %v1083
  %v1085 = vrot.slane %v1077, %v1084
  %v1087 = vunpack.c.l.s4 1983009808
  %v1088 = vunpack.c.0.s8 %v1087
  %v1089 = vlaneseq
  %v1090 = vshrl.u32 %v1089, 7
  %v1091 = vsub.s32 %v1088, %v1090
  %v1092 = vrot.slane %v1078, %v1091
  %v1093 = vcombine.low %v1085, %v1092
  %v1094 = vcombine.low %v1065, %v1066
  %v1095 = vcombine.low %v1067, %v1068
  %v1097 = vunpack.c.l.s4 1983009808
  %v1098 = vunpack.c.0.s8 %v1097
  %v1099 = vlaneseq
  %v1100 = vshrl.u32 %v1099, 7
  %v1101 = vsub.s32 %v1098, %v1100
  %v1102 = vrot.slane %v1094, %v1101
  %v1104 = vunpack.c.l.s4 1983009808
  %v1105 = vunpack.c.0.s8 %v1104
  %v1106 = vlaneseq
  %v1107 = vshrl.u32 %v1106, 7
  %v1108 = vsub.s32 %v1105, %v1107
  %v1109 = vrot.slane %v1095, %v1108
  %v1110 = vcombine.low %v1102, %v1109
  %v1113 = vsel %vm708, %v1093, 0.0
  %1114 = vadd.xlane.f32.xlu0 %v1113
  %v1115 = vpop.xlane.xlu0 %1114
  %v1116 = vsel %vm708, %v1110, 0.0
  %1117 = vadd.xlane.f32.xlu0 %v1116
  %v1118 = vpop.xlane.xlu0 %1117
  %v1119 = vlaneseq
  %v1120 = vshrl.u32 %v1119, 7
  %v1121 = vsub.s32 3, %v1120
  %v1122 = vrot.slane %v865, %v1121
  %v1124 = vcombine.high %v1122, %v1122
  %v1126 = vunpack.c.l.s4 1983009808
  %v1127 = vunpack.c.0.s8 %v1126
  %v1128 = vlaneseq
  %v1129 = vshrl.u32 %v1128, 7
  %v1130 = vsub.s32 %v1127, %v1129
  %v1131 = vrot.slane %v1122, %v1130
  %v1133 = vunpack.c.l.s4 1983009808
  %v1134 = vunpack.c.0.s8 %v1133
  %v1135 = vlaneseq
  %v1136 = vshrl.u32 %v1135, 7
  %v1137 = vsub.s32 %v1134, %v1136
  %v1138 = vrot.slane %v1124, %v1137
  %v1139 = vcombine.high %v1131, %v1131
  %v1140 = vcombine.high %v1138, %v1138
  %v1145 = vmul.f32 %v857, %v1131
  %v1146 = vmul.f32 %v858, %v1139
  %v1147 = vmul.f32 %v859, %v1138
  %v1148 = vmul.f32 %v860, %v1140
  %v1149 = vmul.f32 %v861, %v1131
  %v1150 = vmul.f32 %v862, %v1139
  %v1151 = vmul.f32 %v863, %v1138
  %v1152 = vmul.f32 %v864, %v1140
  %v1161 = vcombine.low %v1145, %v1146
  %v1162 = vcombine.low %v1147, %v1148
  %v1164 = vunpack.c.l.s4 1983009808
  %v1165 = vunpack.c.0.s8 %v1164
  %v1166 = vlaneseq
  %v1167 = vshrl.u32 %v1166, 7
  %v1168 = vsub.s32 %v1165, %v1167
  %v1169 = vrot.slane %v1161, %v1168
  %v1171 = vunpack.c.l.s4 1983009808
  %v1172 = vunpack.c.0.s8 %v1171
  %v1173 = vlaneseq
  %v1174 = vshrl.u32 %v1173, 7
  %v1175 = vsub.s32 %v1172, %v1174
  %v1176 = vrot.slane %v1162, %v1175
  %v1177 = vcombine.low %v1169, %v1176
  %v1178 = vcombine.low %v1149, %v1150
  %v1179 = vcombine.low %v1151, %v1152
  %v1181 = vunpack.c.l.s4 1983009808
  %v1182 = vunpack.c.0.s8 %v1181
  %v1183 = vlaneseq
  %v1184 = vshrl.u32 %v1183, 7
  %v1185 = vsub.s32 %v1182, %v1184
  %v1186 = vrot.slane %v1178, %v1185
  %v1188 = vunpack.c.l.s4 1983009808
  %v1189 = vunpack.c.0.s8 %v1188
  %v1190 = vlaneseq
  %v1191 = vshrl.u32 %v1190, 7
  %v1192 = vsub.s32 %v1189, %v1191
  %v1193 = vrot.slane %v1179, %v1192
  %v1194 = vcombine.low %v1186, %v1193
  %v1197 = vsel %vm708, %v1177, 0.0
  %1198 = vadd.xlane.f32.xlu0 %v1197
  %v1199 = vpop.xlane.xlu0 %1198
  %v1200 = vsel %vm708, %v1194, 0.0
  %1201 = vadd.xlane.f32.xlu0 %v1200
  %v1202 = vpop.xlane.xlu0 %1201
  %v1205 = vlaneseq
  %v1206 = vand.u32 %v1205, 127
  %v1207 = vadd.s32 %v1206, 4294967295
  %v1208 = vlaneseq
  %v1209 = vshrl.u32 %v1208, 7
  %v1210 = vsub.s32 %v1207, %v1209
  %v1211 = vrot.slane %v1199, %v1210
  %v1212 = vlaneseq
  %v1213 = vshrl.u32 %v1212, 7
  %v1214 = vsub.s32 %v1207, %v1213
  %v1215 = vrot.slane %v1202, %v1214
  %vm1218 = vcmask 7168
  %v1219 = vsel %vm1218, 0.0, %v1211
  %v1220 = vsel %vm1218, 0.0, %v1215
  %v1223 = vadd.s32 %v1206, 1
  %v1224 = vlaneseq
  %v1225 = vshrl.u32 %v1224, 7
  %v1226 = vsub.s32 %v1223, %v1225
  %v1227 = vrot.slane %v947, %v1226
  %v1228 = vlaneseq
  %v1229 = vshrl.u32 %v1228, 7
  %v1230 = vsub.s32 %v1223, %v1229
  %v1231 = vrot.slane %v950, %v1230
  %vm1234 = vcmask 56320
  %v1235 = vsel %vm1234, %v1227, 0.0
  %v1236 = vsel %vm1234, %v1231, 0.0
  %v1239 = vlaneseq
  %v1240 = vshrl.u32 %v1239, 7
  %v1241 = vsub.s32 0, %v1240
  %v1242 = vrot.slane %v1219, %v1241
  %1244 = vbcast.lane.b32.xlu0 %v1242, 256
  %v1245 = vpop.permute.xlu0 %1244
  %v1246 = vlaneseq
  %v1247 = vshrl.u32 %v1246, 7
  %v1248 = vsub.s32 0, %v1247
  %v1249 = vrot.slane %v1220, %v1248
  %1251 = vbcast.lane.b32.xlu0 %v1249, 256
  %v1252 = vpop.permute.xlu0 %1251
  %v1255 = vadd.f32 %v1031, %v1245
  %v1256 = vadd.f32 %v1034, %v1252
  %v1259 = vlaneseq
  %v1260 = vshrl.u32 %v1259, 7
  %v1261 = vsub.s32 1, %v1260
  %v1262 = vrot.slane %v1235, %v1261
  %1264 = vbcast.lane.b32.xlu0 %v1262, 256
  %v1265 = vpop.permute.xlu0 %1264
  %v1266 = vlaneseq
  %v1267 = vshrl.u32 %v1266, 7
  %v1268 = vsub.s32 1, %v1267
  %v1269 = vrot.slane %v1236, %v1268
  %1271 = vbcast.lane.b32.xlu0 %v1269, 256
  %v1272 = vpop.permute.xlu0 %1271
  %v1275 = vadd.f32 %v1115, %v1265
  %v1276 = vadd.f32 %v1118, %v1272
  %1279 = vset.pattern.permute.xlu0 0
  %1280 = vperm.xlu0 %1279, %v1255
  %v1281 = vpop.permute.xlu0 %1280
  %1282 = vset.pattern.permute.xlu0 0
  %1283 = vperm.xlu0 %1282, %v1256
  %v1284 = vpop.permute.xlu0 %1283
  %v1285 = vlaneseq
  %v1286 = vshrl.u32 %v1285, 7
  %v1287 = vsub.s32 %v1206, %v1286
  %v1288 = vrot.slane %v1281, %v1287
  %v1289 = vlaneseq
  %v1290 = vshrl.u32 %v1289, 7
  %v1291 = vsub.s32 %v1206, %v1290
  %v1292 = vrot.slane %v1284, %v1291
  %1297 = vset.pattern.permute.xlu0 0
  %1298 = vperm.xlu0 %1297, %v1275
  %v1299 = vpop.permute.xlu0 %1298
  %1300 = vset.pattern.permute.xlu0 0
  %1301 = vperm.xlu0 %1300, %v1276
  %v1302 = vpop.permute.xlu0 %1301
  %v1303 = vlaneseq
  %v1304 = vshrl.u32 %v1303, 7
  %v1305 = vsub.s32 %v1206, %v1304
  %v1306 = vrot.slane %v1299, %v1305
  %v1307 = vlaneseq
  %v1308 = vshrl.u32 %v1307, 7
  %v1309 = vsub.s32 %v1206, %v1308
  %v1310 = vrot.slane %v1302, %v1309
  %v1313 = vsel %vm166, %v1288, %v1306
  %v1314 = vsel %vm166, %v1292, %v1310
  %v1316 = vlaneseq
  %v1317 = vshrl.u32 %v1316, 7
  %v1318 = vsub.s32 0, %v1317
  %v1319 = vrot.slane %v866, %v1318
  %1320 = vset.pattern.permute.xlu0 0
  %1321 = vperm.xlu0 %1320, %v1319
  %v1322 = vpop.permute.xlu0 %1321
  %v1324 = vadd.f32 %v1313, %v1322
  %v1325 = vadd.f32 %v1314, %v1322
  %1326 = vxpose.xlu0.b32.start [1/16] %v1324, 128
  %1327 = vxpose.xlu0.b32.cont [2/16] 0.0, 128
  %1328 = vxpose.xlu0.b32.cont [3/16] 0.0, 128
  %1329 = vxpose.xlu0.b32.cont [4/16] 0.0, 128
  %1330 = vxpose.xlu0.b32.cont [5/16] 0.0, 128
  %1331 = vxpose.xlu0.b32.cont [6/16] 0.0, 128
  %1332 = vxpose.xlu0.b32.cont [7/16] 0.0, 128
  %1333 = vxpose.xlu0.b32.cont [8/16] 0.0, 128
  %1334 = vxpose.xlu0.b32.cont [9/16] 0.0, 128
  %1335 = vxpose.xlu0.b32.cont [10/16] 0.0, 128
  %1336 = vxpose.xlu0.b32.cont [11/16] 0.0, 128
  %1337 = vxpose.xlu0.b32.cont [12/16] 0.0, 128
  %1338 = vxpose.xlu0.b32.cont [13/16] 0.0, 128
  %1339 = vxpose.xlu0.b32.cont [14/16] 0.0, 128
  %1340 = vxpose.xlu0.b32.cont [15/16] 0.0, 128
  %1341 = vxpose.xlu0.b32.end [16/16] 0.0, 128
  %v1342 = vpop.trf.xlu0
  %v1343 = vpop.trf.xlu0
  %v1344 = vpop.trf.xlu0
  %v1345 = vpop.trf.xlu0
  %v1346 = vpop.trf.xlu0
  %v1347 = vpop.trf.xlu0
  %v1348 = vpop.trf.xlu0
  %v1349 = vpop.trf.xlu0
  %v1350 = vpop.trf.xlu0
  %v1351 = vpop.trf.xlu0
  %v1352 = vpop.trf.xlu0
  %v1353 = vpop.trf.xlu0
  %v1354 = vpop.trf.xlu0
  %v1355 = vpop.trf.xlu0
  %v1356 = vpop.trf.xlu0
  %v1357 = vpop.trf.xlu0
  %1358 = vxpose.xlu0.b32.start [1/16] %v1325, 128
  %1359 = vxpose.xlu0.b32.cont [2/16] 0.0, 128
  %1360 = vxpose.xlu0.b32.cont [3/16] 0.0, 128
  %1361 = vxpose.xlu0.b32.cont [4/16] 0.0, 128
  %1362 = vxpose.xlu0.b32.cont [5/16] 0.0, 128
  %1363 = vxpose.xlu0.b32.cont [6/16] 0.0, 128
  %1364 = vxpose.xlu0.b32.cont [7/16] 0.0, 128
  %1365 = vxpose.xlu0.b32.cont [8/16] 0.0, 128
  %1366 = vxpose.xlu0.b32.cont [9/16] 0.0, 128
  %1367 = vxpose.xlu0.b32.cont [10/16] 0.0, 128
  %1368 = vxpose.xlu0.b32.cont [11/16] 0.0, 128
  %1369 = vxpose.xlu0.b32.cont [12/16] 0.0, 128
  %1370 = vxpose.xlu0.b32.cont [13/16] 0.0, 128
  %1371 = vxpose.xlu0.b32.cont [14/16] 0.0, 128
  %1372 = vxpose.xlu0.b32.cont [15/16] 0.0, 128
  %1373 = vxpose.xlu0.b32.end [16/16] 0.0, 128
  %v1374 = vpop.trf.xlu0
  %v1375 = vpop.trf.xlu0
  %v1376 = vpop.trf.xlu0
  %v1377 = vpop.trf.xlu0
  %v1378 = vpop.trf.xlu0
  %v1379 = vpop.trf.xlu0
  %v1380 = vpop.trf.xlu0
  %v1381 = vpop.trf.xlu0
  %v1382 = vpop.trf.xlu0
  %v1383 = vpop.trf.xlu0
  %v1384 = vpop.trf.xlu0
  %v1385 = vpop.trf.xlu0
  %v1386 = vpop.trf.xlu0
  %v1387 = vpop.trf.xlu0
  %v1388 = vpop.trf.xlu0
  %v1389 = vpop.trf.xlu0
  %v1390 = vtanh.pop %v1342
  %v1391 = vtanh.pop %v1374
  %vm1392 = vcmask 15360
  %1393 = vst.msk [vmem:[%s8] sm:$0xff] %vm1392, %v1390
  %1394 = vst.msk [vmem:[%s8 + $0x8] sm:$0xff] %vm1392, %v1391
  // Predicated region
  $region34: #{tpu_custom_call.1} parent=0 // pred_check
    _
  $region35: #{tpu_custom_call.1} parent=0 // pred_check_branch
    %1396 = sbr.rel (0) target = $region37
  $region36: #{tpu_custom_call.1} parent=0 // pred_region
    _
  $region37: #{tpu_custom_call.1} parent=0 // pred_fallthru
    _
  // Predicated region
  $region38: #{tpu_custom_call.1} parent=0 // pred_check
    _
  $region39: #{tpu_custom_call.1} parent=0 // pred_check_branch
    %1398 = sbr.rel (0) target = $region41
  $region40: #{tpu_custom_call.1} parent=0 // pred_region
    _
  $region41: #{tpu_custom_call.1} parent=0 // pred_fallthru
    _

</llo_original>
